<compile_context>
chip_gen: v6e
topology: v6e:2x2x1
jax: 0.10.0
libtpu: 0.0.40
codegen_flags: <defaults>
</compile_context>

<pallas_src>
import functools
import math

import jax
import jax.numpy as jnp
from jax.experimental import pallas as pl
from jax.experimental.pallas import tpu as pltpu


# ---------------------------------------------------------------------------
# Fused kernel: one batch-block per grid step, everything 2-D, all in VMEM.
# ---------------------------------------------------------------------------

def _fused_cnn_kernel(x_ref, rs1_ref, cw1_ref, b1_ref,
                      rs2_ref, cw2_ref, b2_ref,
                      wstk_ref, fcm_ref, fcg_ref, bfc_ref,
                      out_ref, *, c1, c2):
    f32 = jnp.float32

    # Grid-invariant weights: load once per step, outside the batch-block loop.
    rs1a, rs1b = rs1_ref[0], rs1_ref[1]
    cw1a, cw1b = cw1_ref[0], cw1_ref[1]
    rs2a, rs2b = rs2_ref[0], rs2_ref[1]
    cw2a, cw2b = cw2_ref[0], cw2_ref[1]
    b1, b2 = b1_ref[...], b2_ref[...]
    wstk, fcm, fcg, bfc = wstk_ref[...], fcm_ref[...], fcg_ref[...], bfc_ref[...]

    def conv_relu(x, ra, rb, ca, cb, b):
        # Conv2d(k=2, s=2, p=1) folded into two (row-phase, col-phase) matrix
        # pairs acting on the fused (H, W*C) layout.  The output carries a
        # zero border (pre-baked into ra/rb/ca/cb/b) that doubles as the
        # following max-pool's padding (values are >= 0 post-ReLU).
        y = (jnp.dot(jnp.dot(ra, x, preferred_element_type=f32), ca,
                     preferred_element_type=f32)
             + jnp.dot(jnp.dot(rb, x, preferred_element_type=f32), cb,
                       preferred_element_type=f32)
             + b)
        return jnp.maximum(y, 0.0)

    def pool_2x2_s1_p1(y, c):
        # MaxPool2d(2, stride=1, padding=1) on the bordered (H+2, (W+2)*C)
        # layout: in-register slices + maxima only (no scratch, no stores).
        f = y.shape[1]
        cm = jnp.maximum(y[:, :f - c], y[:, c:])      # W window: lane shift by C
        return jnp.maximum(cm[:-1, :], cm[1:, :])     # H window: sublane shift

    rows = []
    for s in range(x_ref.shape[0]):                   # static unroll over batch block
        x = x_ref[s]                                  # (Hin, Win*Cin)
        p1 = pool_2x2_s1_p1(conv_relu(x, rs1a, rs1b, cw1a, cw1b, b1), c1)
        p2 = pool_2x2_s1_p1(conv_relu(p1, rs2a, rs2b, cw2a, cw2b, b2), c2)

        # fc1 as two dense contractions (no serialized 1-row dot chain):
        #   a[h, h'*ncls + cls] = p2[h, :] . wstk[:, h'*ncls + cls]
        #   logits[cls]         = sum_h a[h, h*ncls + cls] + bias
        a = jnp.dot(p2, wstk, preferred_element_type=f32)        # (Hp2, Hp2*ncls)
        v = jnp.sum(a * fcm, axis=0, keepdims=True)              # (1, Hp2*ncls)
        rows.append(jnp.dot(v, fcg, preferred_element_type=f32) + bfc)

    stacked = rows[0] if len(rows) == 1 else jnp.concatenate(rows, axis=0)
    out_ref[0] = stacked                              # one (B_blk, ncls) store per step


# ---------------------------------------------------------------------------
# One-time weight re-layout (pure index bookkeeping, outside the per-call path)
# ---------------------------------------------------------------------------

def _conv_k2s2p1_pool_ready(w, b, hin, win):
    """Fold Conv2d(k=2, s=2, p=1) into matrices acting on a fused (Hin, Win*Cin)
    activation, with a one-cell zero border baked in so that the following
    MaxPool2d(2, stride=1, padding=1) can be done with plain shifts:

        y[1+oh, (1+ow)*Cout + k] = conv(x)[k, oh, ow] + bias[k],   borders = 0.

    Conv zero-padding is absorbed (out-of-range taps have no nonzero entry);
    the zero border is a valid pool pad because the activation is post-ReLU.
    """
    cout, cin, kh, kw = w.shape
    assert (kh, kw) == (2, 2)
    hout, wout = hin // 2 + 1, win // 2 + 1

    hidx, oh = jnp.arange(hin), jnp.arange(hout)
    R = jnp.stack(
        [(hidx[None, :] == (2 * oh[:, None] + i - 1)).astype(jnp.float32)
         for i in range(kh)], axis=0)                                  # (2, hout, hin)
    R = jnp.pad(R, ((0, 0), (1, 1), (0, 0)))                           # zero border rows

    widx, ow = jnp.arange(win), jnp.arange(wout)
    cws = []
    for i in range(kh):
        m = jnp.zeros((win * cin, wout * cout), jnp.float32)
        for j in range(kw):
            sel = (widx[:, None] == (2 * ow[None, :] + j - 1)).astype(jnp.float32)
            m = m + jnp.einsum("wo,kc->wcok", sel, w[:, :, i, j]
                               ).reshape(win * cin, wout * cout)
        cws.append(m)
    CW = jnp.pad(jnp.stack(cws, axis=0), ((0, 0), (0, 0), (cout, cout)))  # border cols

    btile = jnp.broadcast_to(jnp.tile(b, wout), (hout, wout * cout))
    btile = jnp.pad(btile, ((1, 1), (cout, cout)))                     # zero border
    return R, CW, btile, hout, wout


def prepare_kernel_params(params, in_hw=(28, 28)):
    """Build the kernel-ready weight set once (call outside the jitted forward)."""
    w1, b1 = params["w1"], params["b1"]            # (8,1,2,2), (8,)
    w2, b2 = params["w2"], params["b2"]            # (16,8,2,2), (16,)
    wfc, bfc = params["wfc"], params["bfc"]        # (10,1600), (10,)
    hin, win = in_hw
    c2, ncls = w2.shape[0], wfc.shape[0]

    rs1, cw1, bt1, h1, w1o = _conv_k2s2p1_pool_ready(w1, b1, hin, win)
    hpl1, wpl1 = h1 + 1, w1o + 1                   # pool1 out (2x2, s=1, p=1)
    rs2, cw2, bt2, h2, w2o = _conv_k2s2p1_pool_ready(w2, b2, hpl1, wpl1)
    hpl2, wpl2 = h2 + 1, w2o + 1                   # pool2 out
    assert wfc.shape[1] == c2 * hpl2 * wpl2, "fc1 in_features mismatch with shape chain"

    # Fold PyTorch's NCHW flatten (idx = c*H*W + h*W + w) into the fc weight and
    # restructure it so the whole fc is two dense matmuls in-kernel:
    #   wstk[w*C2+c, h*ncls+cls] = wfc[cls, c, h, w]
    #   fc_mask[h, k]            = 1  iff  k // ncls == h
    #   fc_gath[h*ncls+c, cls]   = 1  iff  c == cls
    wfch = jnp.transpose(wfc.reshape(ncls, c2, hpl2, wpl2), (2, 3, 1, 0))
    wfch = wfch.reshape(hpl2, wpl2 * c2, ncls)
    wstk = jnp.transpose(wfch, (1, 0, 2)).reshape(wpl2 * c2, hpl2 * ncls)
    fc_mask = jnp.repeat(jnp.eye(hpl2, dtype=jnp.float32), ncls, axis=1)
    fc_gath = jnp.tile(jnp.eye(ncls, dtype=jnp.float32), (hpl2, 1))

    return dict(rs1=rs1, cw1=cw1, b1=bt1, rs2=rs2, cw2=cw2, b2=bt2,
                wstk=wstk, fc_mask=fc_mask, fc_gath=fc_gath, bfc=bfc[None, :])


# ---------------------------------------------------------------------------
# Forward wrapper: single fused pallas_call, batch blocked on a "parallel" grid.
# ---------------------------------------------------------------------------

def cnn_forward(x_nchw, kp):
    n, c0, hin, win = x_nchw.shape
    h1, w1o = hin // 2 + 1, win // 2 + 1
    c1 = kp["cw1"].shape[2] // (w1o + 2)
    hpl1, wpl1 = h1 + 1, w1o + 1
    h2, w2o = hpl1 // 2 + 1, wpl1 // 2 + 1
    c2 = kp["cw2"].shape[2] // (w2o + 2)
    hpl2, wpl2 = h2 + 1, w2o + 1
    ncls = kp["bfc"].shape[1]

    # Batch blocking: keep >=2 grid steps when n >= 2 (one per TensorCore on
    # v7x megacore); up to 8 samples per step to amortize the ~0.35 us fixed
    # per-step overhead on single-TC v5e/v6e.
    bb = max(1, min(8, -(-n // 2)))
    nblk = -(-n // bb)
    npad = nblk * bb

    # NCHW -> fused channels-last rows (N, H, W*Cin); free for Cin == 1.
    xf = jnp.transpose(x_nchw, (0, 2, 3, 1)).reshape(n, hin, win * c0)
    xf = xf.astype(jnp.float32)
    if npad != n:
        xf = jnp.pad(xf, ((0, npad - n), (0, 0), (0, 0)))

    # Advisory cost estimate so XLA schedules this latency-bound call sensibly.
    flops_per_sample = (
        2 * 2 * (h1 + 2) * hin * (win * c0)
        + 2 * 2 * (h1 + 2) * (win * c0) * ((w1o + 2) * c1)
        + 2 * 2 * (h2 + 2) * hpl1 * (wpl1 * c1)
        + 2 * 2 * (h2 + 2) * (wpl1 * c1) * ((w2o + 2) * c2)
        + 2 * hpl2 * (wpl2 * c2) * (hpl2 * ncls)
        + 2 * (hpl2 * ncls) * ncls)
    weight_bytes = 4 * sum(math.prod(kp[k].shape) for k in
                           ("rs1", "cw1", "b1", "rs2", "cw2", "b2",
                            "wstk", "fc_mask", "fc_gath", "bfc"))
    cost = pl.CostEstimate(
        flops=int(npad * flops_per_sample), transcendentals=0,
        bytes_accessed=int(weight_bytes + 4 * npad * (hin * win * c0 + ncls)))

    kernel = functools.partial(_fused_cnn_kernel, c1=c1, c2=c2)
    out = pl.pallas_call(
        kernel,
        out_shape=jax.ShapeDtypeStruct((nblk, bb, ncls), jnp.float32),
        grid=(nblk,),
        in_specs=[
            pl.BlockSpec((bb, hin, win * c0), lambda b: (b, 0, 0)),
            pl.BlockSpec(kp["rs1"].shape, lambda b: (0, 0, 0)),
            pl.BlockSpec(kp["cw1"].shape, lambda b: (0, 0, 0)),
            pl.BlockSpec(kp["b1"].shape, lambda b: (0, 0)),
            pl.BlockSpec(kp["rs2"].shape, lambda b: (0, 0, 0)),
            pl.BlockSpec(kp["cw2"].shape, lambda b: (0, 0, 0)),
            pl.BlockSpec(kp["b2"].shape, lambda b: (0, 0)),
            pl.BlockSpec(kp["wstk"].shape, lambda b: (0, 0)),
            pl.BlockSpec(kp["fc_mask"].shape, lambda b: (0, 0)),
            pl.BlockSpec(kp["fc_gath"].shape, lambda b: (0, 0)),
            pl.BlockSpec(kp["bfc"].shape, lambda b: (0, 0)),
        ],
        out_specs=pl.BlockSpec((1, bb, ncls), lambda b: (b, 0, 0)),
        compiler_params=pltpu.CompilerParams(
            dimension_semantics=("parallel",)),
        cost_estimate=cost,
    )(xf, kp["rs1"], kp["cw1"], kp["b1"], kp["rs2"], kp["cw2"], kp["b2"],
      kp["wstk"], kp["fc_mask"], kp["fc_gath"], kp["bfc"])
    return out.reshape(npad, ncls)[:n]


# ---------------------------------------------------------------------------
# Deterministic PyTorch-default-style init, pure-JAX reference, and driver
# ---------------------------------------------------------------------------

def init_params(key):
    ks = jax.random.split(key, 6)

    def uni(k, shape, fan_in):
        bound = 1.0 / float(fan_in) ** 0.5
        return jax.random.uniform(k, shape, jnp.float32, -bound, bound)

    return dict(
        w1=uni(ks[0], (8, 1, 2, 2), 1 * 2 * 2),      # conv1 (Cout, Cin, kh, kw)
        b1=uni(ks[1], (8,), 1 * 2 * 2),
        w2=uni(ks[2], (16, 8, 2, 2), 8 * 2 * 2),     # conv2
        b2=uni(ks[3], (16,), 8 * 2 * 2),
        wfc=uni(ks[4], (10, 1600), 1600),            # fc1 (out, in)
        bfc=uni(ks[5], (10,), 1600),
    )


def reference_forward(x, params):
    """Pure-JAX/XLA replica of the PyTorch module (correctness check only)."""
    def conv(z, w, b):
        y = jax.lax.conv_general_dilated(
            z, w, window_strides=(2, 2), padding=((1, 1), (1, 1)),
            dimension_numbers=("NCHW", "OIHW", "NCHW"))
        return y + b[None, :, None, None]

    def pool(z):
        return jax.lax.reduce_window(
            z, -jnp.inf, jax.lax.max, (1, 1, 2, 2), (1, 1, 1, 1),
            ((0, 0), (0, 0), (1, 1), (1, 1)))

    y = pool(jax.nn.relu(conv(x, params["w1"], params["b1"])))
    y = pool(jax.nn.relu(conv(y, params["w2"], params["b2"])))
    y = y.reshape(y.shape[0], -1)
    return y @ params["wfc"].T + params["bfc"][None, :]


if __name__ == "__main__":
    key = jax.random.PRNGKey(0)
    kx, kw = jax.random.split(key)
    # Input spatial size is fixed by fc1: 1600 = 16 * 10 * 10  =>  28x28, 1 channel.
    x = jax.random.normal(kx, (2, 1, 28, 28), jnp.float32)
    params = init_params(kw)

    kparams = prepare_kernel_params(params, in_hw=(28, 28))   # one-time re-layout
    out = jax.jit(cnn_forward)(x, kparams)
    out = jax.block_until_ready(out)
    assert out.shape == (2, 10) and out.dtype == jnp.float32

    ref = reference_forward(x, params)
    assert jnp.allclose(out, ref, atol=2e-3, rtol=2e-3), (
        "Pallas kernel diverges from the reference forward pass")
    print("KERNEL_OK")
</pallas_src>

<mosaic_0001>
module attributes {stable_mosaic.version = 11 : i64} {
  func.func @_fused_cnn_kernel(%arg0: i32, %arg1: memref<1x28x28xf32, #tpu.memory_space<vmem>>, %arg2: memref<2x17x28xf32, #tpu.memory_space<vmem>>, %arg3: memref<2x28x136xf32, #tpu.memory_space<vmem>>, %arg4: memref<17x136xf32, #tpu.memory_space<vmem>>, %arg5: memref<2x11x16xf32, #tpu.memory_space<vmem>>, %arg6: memref<2x128x176xf32, #tpu.memory_space<vmem>>, %arg7: memref<11x176xf32, #tpu.memory_space<vmem>>, %arg8: memref<160x100xf32, #tpu.memory_space<vmem>>, %arg9: memref<10x100xf32, #tpu.memory_space<vmem>>, %arg10: memref<100x10xf32, #tpu.memory_space<vmem>>, %arg11: memref<1x10xf32, #tpu.memory_space<vmem>>, %arg12: memref<1x1x10xf32, #tpu.memory_space<vmem>>) attributes {dimension_semantics = [#tpu.dimension_semantics<parallel>], iteration_bounds = array<i64: 2>, scalar_prefetch = 0 : i64, scratch_operands = 0 : i64, tpu.core_type = #tpu.core_type<tc>, window_params = [{transform_indices = @transform_0, window_bounds = array<i64: 1, 28, 28>}, {pipeline_mode = #tpu.pipeline_mode<synchronous>, transform_indices = @transform_1, window_bounds = array<i64: 2, 17, 28>}, {pipeline_mode = #tpu.pipeline_mode<synchronous>, transform_indices = @transform_2, window_bounds = array<i64: 2, 28, 136>}, {pipeline_mode = #tpu.pipeline_mode<synchronous>, transform_indices = @transform_3, window_bounds = array<i64: 17, 136>}, {pipeline_mode = #tpu.pipeline_mode<synchronous>, transform_indices = @transform_4, window_bounds = array<i64: 2, 11, 16>}, {pipeline_mode = #tpu.pipeline_mode<synchronous>, transform_indices = @transform_5, window_bounds = array<i64: 2, 128, 176>}, {pipeline_mode = #tpu.pipeline_mode<synchronous>, transform_indices = @transform_6, window_bounds = array<i64: 11, 176>}, {pipeline_mode = #tpu.pipeline_mode<synchronous>, transform_indices = @transform_7, window_bounds = array<i64: 160, 100>}, {pipeline_mode = #tpu.pipeline_mode<synchronous>, transform_indices = @transform_8, window_bounds = array<i64: 10, 100>}, {pipeline_mode = #tpu.pipeline_mode<synchronous>, transform_indices = @transform_9, window_bounds = array<i64: 100, 10>}, {pipeline_mode = #tpu.pipeline_mode<synchronous>, transform_indices = @transform_10, window_bounds = array<i64: 1, 10>}, {transform_indices = @transform_11, window_bounds = array<i64: 1, 1, 10>}]} {
    %c0 = arith.constant 0 : index
    %c0_0 = arith.constant 0 : index
    %c0_1 = arith.constant 0 : index
    %0 = vector.load %arg2[%c0, %c0_0, %c0_1] : memref<2x17x28xf32, #tpu.memory_space<vmem>>, vector<1x17x28xf32>
    %1 = vector.shape_cast %0 : vector<1x17x28xf32> to vector<17x28xf32>
    %c1 = arith.constant 1 : index
    %c0_2 = arith.constant 0 : index
    %c0_3 = arith.constant 0 : index
    %2 = vector.load %arg2[%c1, %c0_2, %c0_3] : memref<2x17x28xf32, #tpu.memory_space<vmem>>, vector<1x17x28xf32>
    %3 = vector.shape_cast %2 : vector<1x17x28xf32> to vector<17x28xf32>
    %c0_4 = arith.constant 0 : index
    %c0_5 = arith.constant 0 : index
    %c0_6 = arith.constant 0 : index
    %4 = vector.load %arg3[%c0_4, %c0_5, %c0_6] : memref<2x28x136xf32, #tpu.memory_space<vmem>>, vector<1x28x136xf32>
    %5 = vector.shape_cast %4 : vector<1x28x136xf32> to vector<28x136xf32>
    %c1_7 = arith.constant 1 : index
    %c0_8 = arith.constant 0 : index
    %c0_9 = arith.constant 0 : index
    %6 = vector.load %arg3[%c1_7, %c0_8, %c0_9] : memref<2x28x136xf32, #tpu.memory_space<vmem>>, vector<1x28x136xf32>
    %7 = vector.shape_cast %6 : vector<1x28x136xf32> to vector<28x136xf32>
    %c0_10 = arith.constant 0 : index
    %c0_11 = arith.constant 0 : index
    %c0_12 = arith.constant 0 : index
    %8 = vector.load %arg5[%c0_10, %c0_11, %c0_12] : memref<2x11x16xf32, #tpu.memory_space<vmem>>, vector<1x11x16xf32>
    %9 = vector.shape_cast %8 : vector<1x11x16xf32> to vector<11x16xf32>
    %c1_13 = arith.constant 1 : index
    %c0_14 = arith.constant 0 : index
    %c0_15 = arith.constant 0 : index
    %10 = vector.load %arg5[%c1_13, %c0_14, %c0_15] : memref<2x11x16xf32, #tpu.memory_space<vmem>>, vector<1x11x16xf32>
    %11 = vector.shape_cast %10 : vector<1x11x16xf32> to vector<11x16xf32>
    %c0_16 = arith.constant 0 : index
    %c0_17 = arith.constant 0 : index
    %c0_18 = arith.constant 0 : index
    %12 = vector.load %arg6[%c0_16, %c0_17, %c0_18] : memref<2x128x176xf32, #tpu.memory_space<vmem>>, vector<1x128x176xf32>
    %13 = vector.shape_cast %12 : vector<1x128x176xf32> to vector<128x176xf32>
    %c1_19 = arith.constant 1 : index
    %c0_20 = arith.constant 0 : index
    %c0_21 = arith.constant 0 : index
    %14 = vector.load %arg6[%c1_19, %c0_20, %c0_21] : memref<2x128x176xf32, #tpu.memory_space<vmem>>, vector<1x128x176xf32>
    %15 = vector.shape_cast %14 : vector<1x128x176xf32> to vector<128x176xf32>
    %c0_22 = arith.constant 0 : index
    %c0_23 = arith.constant 0 : index
    %16 = vector.load %arg4[%c0_22, %c0_23] : memref<17x136xf32, #tpu.memory_space<vmem>>, vector<17x136xf32>
    %c0_24 = arith.constant 0 : index
    %c0_25 = arith.constant 0 : index
    %17 = vector.load %arg7[%c0_24, %c0_25] : memref<11x176xf32, #tpu.memory_space<vmem>>, vector<11x176xf32>
    %c0_26 = arith.constant 0 : index
    %c0_27 = arith.constant 0 : index
    %18 = vector.load %arg8[%c0_26, %c0_27] : memref<160x100xf32, #tpu.memory_space<vmem>>, vector<160x100xf32>
    %c0_28 = arith.constant 0 : index
    %c0_29 = arith.constant 0 : index
    %19 = vector.load %arg9[%c0_28, %c0_29] : memref<10x100xf32, #tpu.memory_space<vmem>>, vector<10x100xf32>
    %c0_30 = arith.constant 0 : index
    %c0_31 = arith.constant 0 : index
    %20 = vector.load %arg10[%c0_30, %c0_31] : memref<100x10xf32, #tpu.memory_space<vmem>>, vector<100x10xf32>
    %c0_32 = arith.constant 0 : index
    %c0_33 = arith.constant 0 : index
    %21 = vector.load %arg11[%c0_32, %c0_33] : memref<1x10xf32, #tpu.memory_space<vmem>>, vector<1x10xf32>
    %c0_34 = arith.constant 0 : index
    %c0_35 = arith.constant 0 : index
    %c0_36 = arith.constant 0 : index
    %22 = vector.load %arg1[%c0_34, %c0_35, %c0_36] : memref<1x28x28xf32, #tpu.memory_space<vmem>>, vector<1x28x28xf32>
    %23 = vector.shape_cast %22 : vector<1x28x28xf32> to vector<28x28xf32>
    %cst = arith.constant dense<0.000000e+00> : vector<17x28xf32>
    %24 = tpu.matmul %1, %23, %cst {dimension_numbers = #tpu.dot_dimension_numbers<[1], [0], [0], [1], [0, 0, 1, 1], [], []>} : vector<17x28xf32>, vector<28x28xf32>, vector<17x28xf32> -> vector<17x28xf32>
    %cst_37 = arith.constant dense<0.000000e+00> : vector<17x136xf32>
    %25 = tpu.matmul %24, %5, %cst_37 {dimension_numbers = #tpu.dot_dimension_numbers<[1], [0], [0], [1], [0, 0, 1, 1], [], []>} : vector<17x28xf32>, vector<28x136xf32>, vector<17x136xf32> -> vector<17x136xf32>
    %cst_38 = arith.constant dense<0.000000e+00> : vector<17x28xf32>
    %26 = tpu.matmul %3, %23, %cst_38 {dimension_numbers = #tpu.dot_dimension_numbers<[1], [0], [0], [1], [0, 0, 1, 1], [], []>} : vector<17x28xf32>, vector<28x28xf32>, vector<17x28xf32> -> vector<17x28xf32>
    %cst_39 = arith.constant dense<0.000000e+00> : vector<17x136xf32>
    %27 = tpu.matmul %26, %7, %cst_39 {dimension_numbers = #tpu.dot_dimension_numbers<[1], [0], [0], [1], [0, 0, 1, 1], [], []>} : vector<17x28xf32>, vector<28x136xf32>, vector<17x136xf32> -> vector<17x136xf32>
    %28 = arith.addf %25, %27 : vector<17x136xf32>
    %29 = arith.addf %28, %16 : vector<17x136xf32>
    %cst_40 = arith.constant 0.000000e+00 : f32
    %30 = vector.broadcast %cst_40 : f32 to vector<17x136xf32>
    %31 = arith.maximumf %29, %30 : vector<17x136xf32>
    %32 = vector.extract_strided_slice %31 {offsets = [0, 0], sizes = [17, 128], strides = [1, 1]} : vector<17x136xf32> to vector<17x128xf32>
    %33 = vector.extract_strided_slice %31 {offsets = [0, 8], sizes = [17, 128], strides = [1, 1]} : vector<17x136xf32> to vector<17x128xf32>
    %34 = arith.maximumf %32, %33 : vector<17x128xf32>
    %35 = vector.extract_strided_slice %34 {offsets = [0, 0], sizes = [16, 128], strides = [1, 1]} : vector<17x128xf32> to vector<16x128xf32>
    %36 = vector.extract_strided_slice %34 {offsets = [1, 0], sizes = [16, 128], strides = [1, 1]} : vector<17x128xf32> to vector<16x128xf32>
    %37 = arith.maximumf %35, %36 : vector<16x128xf32>
    %cst_41 = arith.constant dense<0.000000e+00> : vector<11x128xf32>
    %38 = tpu.matmul %9, %37, %cst_41 {dimension_numbers = #tpu.dot_dimension_numbers<[1], [0], [0], [1], [0, 0, 1, 1], [], []>} : vector<11x16xf32>, vector<16x128xf32>, vector<11x128xf32> -> vector<11x128xf32>
    %cst_42 = arith.constant dense<0.000000e+00> : vector<11x176xf32>
    %39 = tpu.matmul %38, %13, %cst_42 {dimension_numbers = #tpu.dot_dimension_numbers<[1], [0], [0], [1], [0, 0, 1, 1], [], []>} : vector<11x128xf32>, vector<128x176xf32>, vector<11x176xf32> -> vector<11x176xf32>
    %cst_43 = arith.constant dense<0.000000e+00> : vector<11x128xf32>
    %40 = tpu.matmul %11, %37, %cst_43 {dimension_numbers = #tpu.dot_dimension_numbers<[1], [0], [0], [1], [0, 0, 1, 1], [], []>} : vector<11x16xf32>, vector<16x128xf32>, vector<11x128xf32> -> vector<11x128xf32>
    %cst_44 = arith.constant dense<0.000000e+00> : vector<11x176xf32>
    %41 = tpu.matmul %40, %15, %cst_44 {dimension_numbers = #tpu.dot_dimension_numbers<[1], [0], [0], [1], [0, 0, 1, 1], [], []>} : vector<11x128xf32>, vector<128x176xf32>, vector<11x176xf32> -> vector<11x176xf32>
    %42 = arith.addf %39, %41 : vector<11x176xf32>
    %43 = arith.addf %42, %17 : vector<11x176xf32>
    %cst_45 = arith.constant 0.000000e+00 : f32
    %44 = vector.broadcast %cst_45 : f32 to vector<11x176xf32>
    %45 = arith.maximumf %43, %44 : vector<11x176xf32>
    %46 = vector.extract_strided_slice %45 {offsets = [0, 0], sizes = [11, 160], strides = [1, 1]} : vector<11x176xf32> to vector<11x160xf32>
    %47 = vector.extract_strided_slice %45 {offsets = [0, 16], sizes = [11, 160], strides = [1, 1]} : vector<11x176xf32> to vector<11x160xf32>
    %48 = arith.maximumf %46, %47 : vector<11x160xf32>
    %49 = vector.extract_strided_slice %48 {offsets = [0, 0], sizes = [10, 160], strides = [1, 1]} : vector<11x160xf32> to vector<10x160xf32>
    %50 = vector.extract_strided_slice %48 {offsets = [1, 0], sizes = [10, 160], strides = [1, 1]} : vector<11x160xf32> to vector<10x160xf32>
    %51 = arith.maximumf %49, %50 : vector<10x160xf32>
    %cst_46 = arith.constant dense<0.000000e+00> : vector<10x100xf32>
    %52 = tpu.matmul %51, %18, %cst_46 {dimension_numbers = #tpu.dot_dimension_numbers<[1], [0], [0], [1], [0, 0, 1, 1], [], []>} : vector<10x160xf32>, vector<160x100xf32>, vector<10x100xf32> -> vector<10x100xf32>
    %53 = arith.mulf %52, %19 : vector<10x100xf32>
    %cst_47 = arith.constant dense<0.000000e+00> : vector<100xf32>
    %54 = vector.multi_reduction <add>, %53, %cst_47 [0] : vector<10x100xf32> to vector<100xf32>
    %55 = vector.shape_cast %54 : vector<100xf32> to vector<1x100xf32>
    %cst_48 = arith.constant dense<0.000000e+00> : vector<1x10xf32>
    %56 = tpu.matmul %55, %20, %cst_48 {dimension_numbers = #tpu.dot_dimension_numbers<[1], [0], [0], [1], [0, 0, 1, 1], [], []>} : vector<1x100xf32>, vector<100x10xf32>, vector<1x10xf32> -> vector<1x10xf32>
    %57 = arith.addf %56, %21 : vector<1x10xf32>
    %c0_49 = arith.constant 0 : index
    %c0_50 = arith.constant 0 : index
    %c0_51 = arith.constant 0 : index
    %58 = vector.load %arg12[%c0_49, %c0_50, %c0_51] : memref<1x1x10xf32, #tpu.memory_space<vmem>>, vector<1x1x10xf32>
    %59 = vector.shape_cast %58 : vector<1x1x10xf32> to vector<1x10xf32>
    %60 = vector.shape_cast %57 : vector<1x10xf32> to vector<1x1x10xf32>
    tpu.vector_store %arg12[%c0_49, %c0_50, %c0_51], %60 {strides = array<i32>} : memref<1x1x10xf32, #tpu.memory_space<vmem>>, vector<1x1x10xf32>,
    return
  }
  func.func @transform_0(%arg0: i32) -> (i32, i32, i32) {
    %c0_i32 = arith.constant 0 : i32
    %c0_i32_0 = arith.constant 0 : i32
    %c0_i32_1 = arith.constant 0 : i32
    return %arg0, %c0_i32, %c0_i32_0 : i32, i32, i32
  }
  func.func @transform_1(%arg0: i32) -> (i32, i32, i32) {
    %c0_i32 = arith.constant 0 : i32
    %c0_i32_0 = arith.constant 0 : i32
    %c0_i32_1 = arith.constant 0 : i32
    %c0_i32_2 = arith.constant 0 : i32
    return %c0_i32, %c0_i32_0, %c0_i32_1 : i32, i32, i32
  }
  func.func @transform_2(%arg0: i32) -> (i32, i32, i32) {
    %c0_i32 = arith.constant 0 : i32
    %c0_i32_0 = arith.constant 0 : i32
    %c0_i32_1 = arith.constant 0 : i32
    %c0_i32_2 = arith.constant 0 : i32
    return %c0_i32, %c0_i32_0, %c0_i32_1 : i32, i32, i32
  }
  func.func @transform_3(%arg0: i32) -> (i32, i32) {
    %c0_i32 = arith.constant 0 : i32
    %c0_i32_0 = arith.constant 0 : i32
    %c0_i32_1 = arith.constant 0 : i32
    return %c0_i32, %c0_i32_0 : i32, i32
  }
  func.func @transform_4(%arg0: i32) -> (i32, i32, i32) {
    %c0_i32 = arith.constant 0 : i32
    %c0_i32_0 = arith.constant 0 : i32
    %c0_i32_1 = arith.constant 0 : i32
    %c0_i32_2 = arith.constant 0 : i32
    return %c0_i32, %c0_i32_0, %c0_i32_1 : i32, i32, i32
  }
  func.func @transform_5(%arg0: i32) -> (i32, i32, i32) {
    %c0_i32 = arith.constant 0 : i32
    %c0_i32_0 = arith.constant 0 : i32
    %c0_i32_1 = arith.constant 0 : i32
    %c0_i32_2 = arith.constant 0 : i32
    return %c0_i32, %c0_i32_0, %c0_i32_1 : i32, i32, i32
  }
  func.func @transform_6(%arg0: i32) -> (i32, i32) {
    %c0_i32 = arith.constant 0 : i32
    %c0_i32_0 = arith.constant 0 : i32
    %c0_i32_1 = arith.constant 0 : i32
    return %c0_i32, %c0_i32_0 : i32, i32
  }
  func.func @transform_7(%arg0: i32) -> (i32, i32) {
    %c0_i32 = arith.constant 0 : i32
    %c0_i32_0 = arith.constant 0 : i32
    %c0_i32_1 = arith.constant 0 : i32
    return %c0_i32, %c0_i32_0 : i32, i32
  }
  func.func @transform_8(%arg0: i32) -> (i32, i32) {
    %c0_i32 = arith.constant 0 : i32
    %c0_i32_0 = arith.constant 0 : i32
    %c0_i32_1 = arith.constant 0 : i32
    return %c0_i32, %c0_i32_0 : i32, i32
  }
  func.func @transform_9(%arg0: i32) -> (i32, i32) {
    %c0_i32 = arith.constant 0 : i32
    %c0_i32_0 = arith.constant 0 : i32
    %c0_i32_1 = arith.constant 0 : i32
    return %c0_i32, %c0_i32_0 : i32, i32
  }
  func.func @transform_10(%arg0: i32) -> (i32, i32) {
    %c0_i32 = arith.constant 0 : i32
    %c0_i32_0 = arith.constant 0 : i32
    %c0_i32_1 = arith.constant 0 : i32
    return %c0_i32, %c0_i32_0 : i32, i32
  }
  func.func @transform_11(%arg0: i32) -> (i32, i32, i32) {
    %c0_i32 = arith.constant 0 : i32
    %c0_i32_0 = arith.constant 0 : i32
    %c0_i32_1 = arith.constant 0 : i32
    return %arg0, %c0_i32, %c0_i32_0 : i32, i32, i32
  }
}

</mosaic_0001>

<llo_original>
// kernel: cnn_forward.1
$region0: #{cnn_forward.1}
  #allocation0 [shape = 'u32[]', space=smem, size = 0x4, offset = 0x4, fixed_abs, tag = 'smem constant byte address 0x4 - core index']
  #allocation1 [shape = 'u32[144,128]{1,0:T(1,128)}', space=vmem, size = 0x12000, scoped, tag = 'internal scratch']
  %s0 = inlined_call_operand.vmem [shape: f32[2,28,28], index: 0, kind: input, shape index: {}]
  %s1 = inlined_call_operand.vmem [shape: f32[2,17,28], index: 1, kind: input, shape index: {}]
  %s2 = inlined_call_operand.vmem [shape: f32[2,28,136], index: 2, kind: input, shape index: {}]
  %s3 = inlined_call_operand.vmem [shape: f32[17,136], index: 3, kind: input, shape index: {}]
  %s4 = inlined_call_operand.vmem [shape: f32[2,11,16], index: 4, kind: input, shape index: {}]
  %s5 = inlined_call_operand.vmem [shape: f32[2,128,176], index: 5, kind: input, shape index: {}]
  %s6 = inlined_call_operand.vmem [shape: f32[11,176], index: 6, kind: input, shape index: {}]
  %s7 = inlined_call_operand.vmem [shape: f32[160,100], index: 7, kind: input, shape index: {}]
  %s8 = inlined_call_operand.vmem [shape: f32[10,100], index: 8, kind: input, shape index: {}]
  %s9 = inlined_call_operand.vmem [shape: f32[100,10], index: 9, kind: input, shape index: {}]
  %s10 = inlined_call_operand.vmem [shape: f32[1,10], index: 10, kind: input, shape index: {}]
  %s11 = inlined_call_operand.hbm [shape: f32[2,1,10], index: 11, kind: output, shape index: {}]
  %s12 = sld [smem:[#allocation0]]
  $region77: #{cnn_forward.1} parent=0
    _
  %s14 = ssub.s32 1, %s12
  %s15 = scalar_select 0, %s14, %s12
  $region1: #{cnn_forward.1} parent=0
    #allocation2 [shape = 'u8[1024]{0}', space=vmem, size = 0x400, scoped, tag = 'output window, operand 0']
    #allocation3 [shape = 's32[2]{0}', space=sflag, size = 0x8, scoped, tag = 'scoped memory for cnn_forward.1']
    %16 = vsyncpa [#allocation3], 0
    %s17 = scalar_lea.sflag [#allocation3], 1
    %18 = vsyncpa %s17, 0
    loop: start=0, step=1, limit=4
    $region2: #{cnn_forward.1} parent=1 // loop_pre_header
      _
    $region3: #{cnn_forward.1} parent=1 // loop_header
      %s20 = sphi 0, %s24
      %p21 = scmp.ge.s32.totalorder %s20, 4
      %s30 = sphi 0, %s32
      %s33 = sphi 0, %s30
      %s34 = sphi 0, %s33
      %s50 = sphi 0, %s34
      %s54 = sphi 0, %s54
      %s56 = sphi 0, %s54
      %s57 = sphi 0, %s56
      %s71 = sphi 0, %s57
      %s75 = sphi 0, %s75
      %s77 = sphi 0, %s75
      %s78 = sphi 0, %s77
      %s92 = sphi 0, %s78
      %s96 = sphi 0, %s96
      %s98 = sphi 0, %s96
      %s99 = sphi 0, %s98
      %s113 = sphi 0, %s99
      %s117 = sphi 0, %s117
      %s119 = sphi 0, %s117
      %s120 = sphi 0, %s119
      %s134 = sphi 0, %s120
      %s138 = sphi 0, %s138
      %s140 = sphi 0, %s138
      %s141 = sphi 0, %s140
      %s155 = sphi 0, %s141
      %s159 = sphi 0, %s159
      %s161 = sphi 0, %s159
      %s162 = sphi 0, %s161
      %s176 = sphi 0, %s162
      %s180 = sphi 0, %s180
      %s182 = sphi 0, %s180
      %s183 = sphi 0, %s182
      %s197 = sphi 0, %s183
      %s201 = sphi 0, %s201
      %s203 = sphi 0, %s201
      %s204 = sphi 0, %s203
      %s218 = sphi 0, %s204
      %s222 = sphi 0, %s222
      %s224 = sphi 0, %s222
      %s225 = sphi 0, %s224
      %s239 = sphi 0, %s225
      %s243 = sphi 0, %s243
      %s245 = sphi 0, %s243
      %s246 = sphi 0, %s245
      %s260 = sphi 0, %s246
      %s266 = sphi 0, %s268
      %s269 = sphi 0, %s266
      %s270 = sphi 0, %s269
      %s286 = sphi 0, %s270
    $region4: #{cnn_forward.1} parent=1 // loop_header_branch
      %23 = sbr.rel (%p21) target = $region8
    $region5: #{cnn_forward.1} parent=1 // loop_body
      %s25 = ssub.s32 %s20, 1
      %s26 = ssub.s32 %s20, 2
      %s27 = sadd.s32 %s20, 1
      %s28 = ssub.s32 %s20, %s27
      %p29 = scmp.eq.s32.totalorder %s28, 0
      %s31 = sadd.s32 %s30, 1
      %s32 = scalar_select %p29, %s30, %s31
      %p35 = pneg %p29
      %p36 = scmp.eq.s32.totalorder %s20, 1
      %p37 = por %p35, %p36
      %p38 = scmp.ne.s32.totalorder %s30, %s33
      %p39 = scmp.eq.s32.totalorder %s20, 0
      %p40 = por %p38, %p39
      %p41 = scmp.ne.s32.totalorder %s30, %s33
      %p42 = scmp.eq.s32.totalorder %s25, 1
      %p43 = por %p41, %p42
      %p44 = scmp.ne.s32.totalorder %s33, %s34
      %p45 = scmp.eq.s32.totalorder %s25, 0
      %p46 = por %p44, %p45
      %p47 = scmp.ne.s32.totalorder %s33, %s34
      %p48 = scmp.eq.s32.totalorder %s26, 1
      %p49 = por %p47, %p48
      %p51 = scmp.ne.s32.totalorder %s34, %s50
      %p52 = scmp.eq.s32.totalorder %s26, 0
      %p53 = por %p51, %p52
      %s55 = sadd.s32 %s54, 1
      %p58 = scmp.eq.s32.totalorder %s20, 1
      %p59 = scmp.ne.s32.totalorder %s54, %s56
      %p60 = scmp.eq.s32.totalorder %s20, 0
      %p61 = por %p59, %p60
      %p62 = scmp.ne.s32.totalorder %s54, %s56
      %p63 = scmp.eq.s32.totalorder %s25, 1
      %p64 = por %p62, %p63
      %p65 = scmp.ne.s32.totalorder %s56, %s57
      %p66 = scmp.eq.s32.totalorder %s25, 0
      %p67 = por %p65, %p66
      %p68 = scmp.ne.s32.totalorder %s56, %s57
      %p69 = scmp.eq.s32.totalorder %s26, 1
      %p70 = por %p68, %p69
      %p72 = scmp.ne.s32.totalorder %s57, %s71
      %p73 = scmp.eq.s32.totalorder %s26, 0
      %p74 = por %p72, %p73
      %s76 = sadd.s32 %s75, 1
      %p79 = scmp.eq.s32.totalorder %s20, 1
      %p80 = scmp.ne.s32.totalorder %s75, %s77
      %p81 = scmp.eq.s32.totalorder %s20, 0
      %p82 = por %p80, %p81
      %p83 = scmp.ne.s32.totalorder %s75, %s77
      %p84 = scmp.eq.s32.totalorder %s25, 1
      %p85 = por %p83, %p84
      %p86 = scmp.ne.s32.totalorder %s77, %s78
      %p87 = scmp.eq.s32.totalorder %s25, 0
      %p88 = por %p86, %p87
      %p89 = scmp.ne.s32.totalorder %s77, %s78
      %p90 = scmp.eq.s32.totalorder %s26, 1
      %p91 = por %p89, %p90
      %p93 = scmp.ne.s32.totalorder %s78, %s92
      %p94 = scmp.eq.s32.totalorder %s26, 0
      %p95 = por %p93, %p94
      %s97 = sadd.s32 %s96, 1
      %p100 = scmp.eq.s32.totalorder %s20, 1
      %p101 = scmp.ne.s32.totalorder %s96, %s98
      %p102 = scmp.eq.s32.totalorder %s20, 0
      %p103 = por %p101, %p102
      %p104 = scmp.ne.s32.totalorder %s96, %s98
      %p105 = scmp.eq.s32.totalorder %s25, 1
      %p106 = por %p104, %p105
      %p107 = scmp.ne.s32.totalorder %s98, %s99
      %p108 = scmp.eq.s32.totalorder %s25, 0
      %p109 = por %p107, %p108
      %p110 = scmp.ne.s32.totalorder %s98, %s99
      %p111 = scmp.eq.s32.totalorder %s26, 1
      %p112 = por %p110, %p111
      %p114 = scmp.ne.s32.totalorder %s99, %s113
      %p115 = scmp.eq.s32.totalorder %s26, 0
      %p116 = por %p114, %p115
      %s118 = sadd.s32 %s117, 1
      %p121 = scmp.eq.s32.totalorder %s20, 1
      %p122 = scmp.ne.s32.totalorder %s117, %s119
      %p123 = scmp.eq.s32.totalorder %s20, 0
      %p124 = por %p122, %p123
      %p125 = scmp.ne.s32.totalorder %s117, %s119
      %p126 = scmp.eq.s32.totalorder %s25, 1
      %p127 = por %p125, %p126
      %p128 = scmp.ne.s32.totalorder %s119, %s120
      %p129 = scmp.eq.s32.totalorder %s25, 0
      %p130 = por %p128, %p129
      %p131 = scmp.ne.s32.totalorder %s119, %s120
      %p132 = scmp.eq.s32.totalorder %s26, 1
      %p133 = por %p131, %p132
      %p135 = scmp.ne.s32.totalorder %s120, %s134
      %p136 = scmp.eq.s32.totalorder %s26, 0
      %p137 = por %p135, %p136
      %s139 = sadd.s32 %s138, 1
      %p142 = scmp.eq.s32.totalorder %s20, 1
      %p143 = scmp.ne.s32.totalorder %s138, %s140
      %p144 = scmp.eq.s32.totalorder %s20, 0
      %p145 = por %p143, %p144
      %p146 = scmp.ne.s32.totalorder %s138, %s140
      %p147 = scmp.eq.s32.totalorder %s25, 1
      %p148 = por %p146, %p147
      %p149 = scmp.ne.s32.totalorder %s140, %s141
      %p150 = scmp.eq.s32.totalorder %s25, 0
      %p151 = por %p149, %p150
      %p152 = scmp.ne.s32.totalorder %s140, %s141
      %p153 = scmp.eq.s32.totalorder %s26, 1
      %p154 = por %p152, %p153
      %p156 = scmp.ne.s32.totalorder %s141, %s155
      %p157 = scmp.eq.s32.totalorder %s26, 0
      %p158 = por %p156, %p157
      %s160 = sadd.s32 %s159, 1
      %p163 = scmp.eq.s32.totalorder %s20, 1
      %p164 = scmp.ne.s32.totalorder %s159, %s161
      %p165 = scmp.eq.s32.totalorder %s20, 0
      %p166 = por %p164, %p165
      %p167 = scmp.ne.s32.totalorder %s159, %s161
      %p168 = scmp.eq.s32.totalorder %s25, 1
      %p169 = por %p167, %p168
      %p170 = scmp.ne.s32.totalorder %s161, %s162
      %p171 = scmp.eq.s32.totalorder %s25, 0
      %p172 = por %p170, %p171
      %p173 = scmp.ne.s32.totalorder %s161, %s162
      %p174 = scmp.eq.s32.totalorder %s26, 1
      %p175 = por %p173, %p174
      %p177 = scmp.ne.s32.totalorder %s162, %s176
      %p178 = scmp.eq.s32.totalorder %s26, 0
      %p179 = por %p177, %p178
      %s181 = sadd.s32 %s180, 1
      %p184 = scmp.eq.s32.totalorder %s20, 1
      %p185 = scmp.ne.s32.totalorder %s180, %s182
      %p186 = scmp.eq.s32.totalorder %s20, 0
      %p187 = por %p185, %p186
      %p188 = scmp.ne.s32.totalorder %s180, %s182
      %p189 = scmp.eq.s32.totalorder %s25, 1
      %p190 = por %p188, %p189
      %p191 = scmp.ne.s32.totalorder %s182, %s183
      %p192 = scmp.eq.s32.totalorder %s25, 0
      %p193 = por %p191, %p192
      %p194 = scmp.ne.s32.totalorder %s182, %s183
      %p195 = scmp.eq.s32.totalorder %s26, 1
      %p196 = por %p194, %p195
      %p198 = scmp.ne.s32.totalorder %s183, %s197
      %p199 = scmp.eq.s32.totalorder %s26, 0
      %p200 = por %p198, %p199
      %s202 = sadd.s32 %s201, 1
      %p205 = scmp.eq.s32.totalorder %s20, 1
      %p206 = scmp.ne.s32.totalorder %s201, %s203
      %p207 = scmp.eq.s32.totalorder %s20, 0
      %p208 = por %p206, %p207
      %p209 = scmp.ne.s32.totalorder %s201, %s203
      %p210 = scmp.eq.s32.totalorder %s25, 1
      %p211 = por %p209, %p210
      %p212 = scmp.ne.s32.totalorder %s203, %s204
      %p213 = scmp.eq.s32.totalorder %s25, 0
      %p214 = por %p212, %p213
      %p215 = scmp.ne.s32.totalorder %s203, %s204
      %p216 = scmp.eq.s32.totalorder %s26, 1
      %p217 = por %p215, %p216
      %p219 = scmp.ne.s32.totalorder %s204, %s218
      %p220 = scmp.eq.s32.totalorder %s26, 0
      %p221 = por %p219, %p220
      %s223 = sadd.s32 %s222, 1
      %p226 = scmp.eq.s32.totalorder %s20, 1
      %p227 = scmp.ne.s32.totalorder %s222, %s224
      %p228 = scmp.eq.s32.totalorder %s20, 0
      %p229 = por %p227, %p228
      %p230 = scmp.ne.s32.totalorder %s222, %s224
      %p231 = scmp.eq.s32.totalorder %s25, 1
      %p232 = por %p230, %p231
      %p233 = scmp.ne.s32.totalorder %s224, %s225
      %p234 = scmp.eq.s32.totalorder %s25, 0
      %p235 = por %p233, %p234
      %p236 = scmp.ne.s32.totalorder %s224, %s225
      %p237 = scmp.eq.s32.totalorder %s26, 1
      %p238 = por %p236, %p237
      %p240 = scmp.ne.s32.totalorder %s225, %s239
      %p241 = scmp.eq.s32.totalorder %s26, 0
      %p242 = por %p240, %p241
      %s244 = sadd.s32 %s243, 1
      %p247 = scmp.eq.s32.totalorder %s20, 1
      %p248 = scmp.ne.s32.totalorder %s243, %s245
      %p249 = scmp.eq.s32.totalorder %s20, 0
      %p250 = por %p248, %p249
      %p251 = scmp.ne.s32.totalorder %s243, %s245
      %p252 = scmp.eq.s32.totalorder %s25, 1
      %p253 = por %p251, %p252
      %p254 = scmp.ne.s32.totalorder %s245, %s246
      %p255 = scmp.eq.s32.totalorder %s25, 0
      %p256 = por %p254, %p255
      %p257 = scmp.ne.s32.totalorder %s245, %s246
      %p258 = scmp.eq.s32.totalorder %s26, 1
      %p259 = por %p257, %p258
      %p261 = scmp.ne.s32.totalorder %s246, %s260
      %p262 = scmp.eq.s32.totalorder %s26, 0
      %p263 = por %p261, %p262
      %s264 = ssub.s32 %s20, %s27
      %p265 = scmp.eq.s32.totalorder %s264, 0
      %s267 = sadd.s32 %s266, 1
      %s268 = scalar_select %p265, %s266, %s267
      %p271 = pneg %p265
      %p272 = scmp.eq.s32.totalorder %s20, 1
      %p273 = por %p271, %p272
      %p274 = scmp.ne.s32.totalorder %s266, %s269
      %p275 = scmp.eq.s32.totalorder %s20, 0
      %p276 = por %p274, %p275
      %p277 = scmp.ne.s32.totalorder %s266, %s269
      %p278 = scmp.eq.s32.totalorder %s25, 1
      %p279 = por %p277, %p278
      %p280 = scmp.ne.s32.totalorder %s269, %s270
      %p281 = scmp.eq.s32.totalorder %s25, 0
      %p282 = por %p280, %p281
      %p283 = scmp.ne.s32.totalorder %s269, %s270
      %p284 = scmp.eq.s32.totalorder %s26, 1
      %p285 = por %p283, %p284
      %p287 = scmp.ne.s32.totalorder %s270, %s286
      %p288 = scmp.eq.s32.totalorder %s26, 0
      %p289 = por %p287, %p288
      %p290 = scmp.le.s32.totalorder 1, %s20
      %p291 = scmp.lt.s32.totalorder %s20, 3
      %p292 = pnand %p290, %p291
      %p293 = pneg %p292
      // Predicated region
      $region9: #{cnn_forward.1} parent=5 // pred_check
        _
      $region10: #{cnn_forward.1} parent=5 // pred_check_branch
        %295 = sbr.rel (%p292) target = $region12
      $region11: #{cnn_forward.1} parent=5 // pred_region
        %s296 = ssub.s32 %s20, 1
        // Predicated region
        $region13: #{cnn_forward.1} parent=11 // pred_check
          %p297 = pneg %p67
        $region14: #{cnn_forward.1} parent=11 // pred_check_branch
          %299 = sbr.rel (%p297) target = $region16
        $region15: #{cnn_forward.1} parent=11 // pred_region
          _
        $region16: #{cnn_forward.1} parent=11 // pred_fallthru
          _
        // Predicated region
        $region17: #{cnn_forward.1} parent=11 // pred_check
          %p300 = pneg %p88
        $region18: #{cnn_forward.1} parent=11 // pred_check_branch
          %302 = sbr.rel (%p300) target = $region20
        $region19: #{cnn_forward.1} parent=11 // pred_region
          _
        $region20: #{cnn_forward.1} parent=11 // pred_fallthru
          _
        // Predicated region
        $region21: #{cnn_forward.1} parent=11 // pred_check
          %p303 = pneg %p109
        $region22: #{cnn_forward.1} parent=11 // pred_check_branch
          %305 = sbr.rel (%p303) target = $region24
        $region23: #{cnn_forward.1} parent=11 // pred_region
          _
        $region24: #{cnn_forward.1} parent=11 // pred_fallthru
          _
        // Predicated region
        $region25: #{cnn_forward.1} parent=11 // pred_check
          %p306 = pneg %p130
        $region26: #{cnn_forward.1} parent=11 // pred_check_branch
          %308 = sbr.rel (%p306) target = $region28
        $region27: #{cnn_forward.1} parent=11 // pred_region
          _
        $region28: #{cnn_forward.1} parent=11 // pred_fallthru
          _
        // Predicated region
        $region29: #{cnn_forward.1} parent=11 // pred_check
          %p309 = pneg %p151
        $region30: #{cnn_forward.1} parent=11 // pred_check_branch
          %311 = sbr.rel (%p309) target = $region32
        $region31: #{cnn_forward.1} parent=11 // pred_region
          _
        $region32: #{cnn_forward.1} parent=11 // pred_fallthru
          _
        // Predicated region
        $region33: #{cnn_forward.1} parent=11 // pred_check
          %p312 = pneg %p172
        $region34: #{cnn_forward.1} parent=11 // pred_check_branch
          %314 = sbr.rel (%p312) target = $region36
        $region35: #{cnn_forward.1} parent=11 // pred_region
          _
        $region36: #{cnn_forward.1} parent=11 // pred_fallthru
          _
        // Predicated region
        $region37: #{cnn_forward.1} parent=11 // pred_check
          %p315 = pneg %p193
        $region38: #{cnn_forward.1} parent=11 // pred_check_branch
          %317 = sbr.rel (%p315) target = $region40
        $region39: #{cnn_forward.1} parent=11 // pred_region
          _
        $region40: #{cnn_forward.1} parent=11 // pred_fallthru
          _
        // Predicated region
        $region41: #{cnn_forward.1} parent=11 // pred_check
          %p318 = pneg %p214
        $region42: #{cnn_forward.1} parent=11 // pred_check_branch
          %320 = sbr.rel (%p318) target = $region44
        $region43: #{cnn_forward.1} parent=11 // pred_region
          _
        $region44: #{cnn_forward.1} parent=11 // pred_fallthru
          _
        // Predicated region
        $region45: #{cnn_forward.1} parent=11 // pred_check
          %p321 = pneg %p235
        $region46: #{cnn_forward.1} parent=11 // pred_check_branch
          %323 = sbr.rel (%p321) target = $region48
        $region47: #{cnn_forward.1} parent=11 // pred_region
          _
        $region48: #{cnn_forward.1} parent=11 // pred_fallthru
          _
        // Predicated region
        $region49: #{cnn_forward.1} parent=11 // pred_check
          %p324 = pneg %p256
        $region50: #{cnn_forward.1} parent=11 // pred_check_branch
          %326 = sbr.rel (%p324) target = $region52
        $region51: #{cnn_forward.1} parent=11 // pred_region
          _
        $region52: #{cnn_forward.1} parent=11 // pred_fallthru
          _
      $region12: #{cnn_forward.1} parent=5 // pred_fallthru
        _
      %p327 = scmp.lt.s32.totalorder %s20, 2
      // Predicated region
      $region53: #{cnn_forward.1} parent=5 // pred_check
        %p328 = pneg %p327
      $region54: #{cnn_forward.1} parent=5 // pred_check_branch
        %330 = sbr.rel (%p328) target = $region56
      $region55: #{cnn_forward.1} parent=5 // pred_region
        // Predicated region
        $region57: #{cnn_forward.1} parent=55 // pred_check
          %p331 = pneg %p40
        $region58: #{cnn_forward.1} parent=55 // pred_check_branch
          %333 = sbr.rel (%p331) target = $region60
        $region59: #{cnn_forward.1} parent=55 // pred_region
          %p334 = scmp.lt.s32.totalorder %s20, 1
          %s335 = scalar_select %p334, %s20, 1
          %s336 = smul.addr %s335, 4
          %s337 = smul.addr %s336, 8
          %s338 = scalar_lea.vmem %s0, %s337
        $region60: #{cnn_forward.1} parent=55 // pred_fallthru
          _
      $region56: #{cnn_forward.1} parent=5 // pred_fallthru
        _
      %p339 = scmp.le.s32.totalorder 1, %s20
      %p340 = scmp.lt.s32.totalorder %s20, 3
      %p341 = pnand %p339, %p340
      %p342 = pneg %p341
      // Predicated region
      $region61: #{cnn_forward.1} parent=5 // pred_check
        _
      $region62: #{cnn_forward.1} parent=5 // pred_check_branch
        %344 = sbr.rel (%p341) target = $region64
      $region63: #{cnn_forward.1} parent=5 // pred_region
        %s345 = ssub.s32 %s20, 1
        %p346 = scmp.lt.s32.totalorder %s25, 1
        %s347 = scalar_select %p346, %s25, 1
        %s348 = smul.addr %s347, 4
        %s349 = smul.addr %s348, 8
        %s350 = scalar_lea.vmem %s0, %s349
        %p351 = pneg %p46
        %p352 = pneg %p43
        %p353 = pneg %p67
        %p354 = pneg %p64
        %p355 = pneg %p88
        %p356 = pneg %p85
        %p357 = pneg %p109
        %p358 = pneg %p106
        %p359 = pneg %p130
        %p360 = pneg %p127
        %p361 = pneg %p151
        %p362 = pneg %p148
        %p363 = pneg %p172
        %p364 = pneg %p169
        %p365 = pneg %p193
        %p366 = pneg %p190
        %p367 = pneg %p214
        %p368 = pneg %p211
        %p369 = pneg %p235
        %p370 = pneg %p232
        %p371 = pneg %p256
        %p372 = pneg %p253
        %p373 = pneg %p282
        %p374 = pneg %p279
        %s375 = sand.u32 %s269, 1
        %s376 = scalar_lea.sflag [#allocation3], %s375
        %s377 = sand.u32 %s269, 1
        %s378 = scalar_lea.vmem [#allocation2], %s377
        %p379 = scmp.lt.s32.totalorder %s25, 1
        %s380 = scalar_select %p379, %s25, 1
        %s381 = smul.addr %s380, 4
        %s382 = smul.addr %s381, 8
        %s383 = scalar_lea.vmem %s0, %s382
        %v384 = vld [vmem:[%s1] sm:$0xff]
        %v385 = vld [vmem:[%s1 + $0x8] sm:$0xff]
        %v386 = vld [vmem:[%s1 + $0x10] sm:$0x1]
        %s387 = scalar_lea.vmem %s1, 24
        %v388 = vld [vmem:[%s387] sm:$0xff]
        %v389 = vld [vmem:[%s387 + $0x8] sm:$0xff]
        %v390 = vld [vmem:[%s387 + $0x10] sm:$0x1]
        %v391 = vld [vmem:[%s2] sm:$0xff]
        %v392 = vld [vmem:[%s2 + $0x8] sm:$0xff]
        %v393 = vld [vmem:[%s2 + $0x10] sm:$0xff]
        %v394 = vld [vmem:[%s2 + $0x18] sm:$0xff]
        %v395 = vld [vmem:[%s2 + $0x20] sm:$0xff]
        %v396 = vld [vmem:[%s2 + $0x28] sm:$0xff]
        %v397 = vld [vmem:[%s2 + $0x30] sm:$0xf]
        %v398 = vld [vmem:[%s2 + $0x38] sm:$0xf]
        %s399 = scalar_lea.vmem %s2, 64
        %v400 = vld [vmem:[%s399] sm:$0xff]
        %v401 = vld [vmem:[%s399 + $0x8] sm:$0xff]
        %v402 = vld [vmem:[%s399 + $0x10] sm:$0xff]
        %v403 = vld [vmem:[%s399 + $0x18] sm:$0xff]
        %v404 = vld [vmem:[%s399 + $0x20] sm:$0xff]
        %v405 = vld [vmem:[%s399 + $0x28] sm:$0xff]
        %v406 = vld [vmem:[%s399 + $0x30] sm:$0xf]
        %v407 = vld [vmem:[%s399 + $0x38] sm:$0xf]
        %v408 = vld [vmem:[%s4] sm:$0xff]
        %v409 = vld [vmem:[%s4 + $0x8] sm:$0x7]
        %s410 = scalar_lea.vmem %s4, 16
        %v411 = vld [vmem:[%s410] sm:$0xff]
        %v412 = vld [vmem:[%s410 + $0x8] sm:$0x7]
        %v413 = vld [vmem:[%s5] sm:$0xff]
        %v414 = vld [vmem:[%s5 + $0x8] sm:$0xff]
        %v415 = vld [vmem:[%s5 + $0x10] sm:$0xff]
        %v416 = vld [vmem:[%s5 + $0x18] sm:$0xff]
        %v417 = vld [vmem:[%s5 + $0x20] sm:$0xff]
        %v418 = vld [vmem:[%s5 + $0x28] sm:$0xff]
        %v419 = vld [vmem:[%s5 + $0x30] sm:$0xff]
        %v420 = vld [vmem:[%s5 + $0x38] sm:$0xff]
        %v421 = vld [vmem:[%s5 + $0x40] sm:$0xff]
        %v422 = vld [vmem:[%s5 + $0x48] sm:$0xff]
        %v423 = vld [vmem:[%s5 + $0x50] sm:$0xff]
        %v424 = vld [vmem:[%s5 + $0x58] sm:$0xff]
        %v425 = vld [vmem:[%s5 + $0x60] sm:$0xff]
        %v426 = vld [vmem:[%s5 + $0x68] sm:$0xff]
        %v427 = vld [vmem:[%s5 + $0x70] sm:$0xff]
        %v428 = vld [vmem:[%s5 + $0x78] sm:$0xff]
        %v429 = vld [vmem:[%s5 + $0x80] sm:$0xff]
        %v430 = vld [vmem:[%s5 + $0x88] sm:$0xff]
        %v431 = vld [vmem:[%s5 + $0x90] sm:$0xff]
        %v432 = vld [vmem:[%s5 + $0x98] sm:$0xff]
        %v433 = vld [vmem:[%s5 + $0xa0] sm:$0xff]
        %v434 = vld [vmem:[%s5 + $0xa8] sm:$0xff]
        %v435 = vld [vmem:[%s5 + $0xb0] sm:$0xff]
        %v436 = vld [vmem:[%s5 + $0xb8] sm:$0xff]
        %v437 = vld [vmem:[%s5 + $0xc0] sm:$0xff]
        %v438 = vld [vmem:[%s5 + $0xc8] sm:$0xff]
        %v439 = vld [vmem:[%s5 + $0xd0] sm:$0xff]
        %v440 = vld [vmem:[%s5 + $0xd8] sm:$0xff]
        %v441 = vld [vmem:[%s5 + $0xe0] sm:$0xff]
        %v442 = vld [vmem:[%s5 + $0xe8] sm:$0xff]
        %v443 = vld [vmem:[%s5 + $0xf0] sm:$0xff]
        %v444 = vld [vmem:[%s5 + $0xf8] sm:$0xff]
        %s445 = scalar_lea.vmem %s5, 256
        %v446 = vld [vmem:[%s445] sm:$0xff]
        %v447 = vld [vmem:[%s445 + $0x8] sm:$0xff]
        %v448 = vld [vmem:[%s445 + $0x10] sm:$0xff]
        %v449 = vld [vmem:[%s445 + $0x18] sm:$0xff]
        %v450 = vld [vmem:[%s445 + $0x20] sm:$0xff]
        %v451 = vld [vmem:[%s445 + $0x28] sm:$0xff]
        %v452 = vld [vmem:[%s445 + $0x30] sm:$0xff]
        %v453 = vld [vmem:[%s445 + $0x38] sm:$0xff]
        %v454 = vld [vmem:[%s445 + $0x40] sm:$0xff]
        %v455 = vld [vmem:[%s445 + $0x48] sm:$0xff]
        %v456 = vld [vmem:[%s445 + $0x50] sm:$0xff]
        %v457 = vld [vmem:[%s445 + $0x58] sm:$0xff]
        %v458 = vld [vmem:[%s445 + $0x60] sm:$0xff]
        %v459 = vld [vmem:[%s445 + $0x68] sm:$0xff]
        %v460 = vld [vmem:[%s445 + $0x70] sm:$0xff]
        %v461 = vld [vmem:[%s445 + $0x78] sm:$0xff]
        %v462 = vld [vmem:[%s445 + $0x80] sm:$0xff]
        %v463 = vld [vmem:[%s445 + $0x88] sm:$0xff]
        %v464 = vld [vmem:[%s445 + $0x90] sm:$0xff]
        %v465 = vld [vmem:[%s445 + $0x98] sm:$0xff]
        %v466 = vld [vmem:[%s445 + $0xa0] sm:$0xff]
        %v467 = vld [vmem:[%s445 + $0xa8] sm:$0xff]
        %v468 = vld [vmem:[%s445 + $0xb0] sm:$0xff]
        %v469 = vld [vmem:[%s445 + $0xb8] sm:$0xff]
        %v470 = vld [vmem:[%s445 + $0xc0] sm:$0xff]
        %v471 = vld [vmem:[%s445 + $0xc8] sm:$0xff]
        %v472 = vld [vmem:[%s445 + $0xd0] sm:$0xff]
        %v473 = vld [vmem:[%s445 + $0xd8] sm:$0xff]
        %v474 = vld [vmem:[%s445 + $0xe0] sm:$0xff]
        %v475 = vld [vmem:[%s445 + $0xe8] sm:$0xff]
        %v476 = vld [vmem:[%s445 + $0xf0] sm:$0xff]
        %v477 = vld [vmem:[%s445 + $0xf8] sm:$0xff]
        %v478 = vld [vmem:[%s3] sm:$0xff]
        %v479 = vld [vmem:[%s3 + $0x8] sm:$0xff]
        %v480 = vld [vmem:[%s3 + $0x10] sm:$0xff]
        %v481 = vld [vmem:[%s3 + $0x18] sm:$0xff]
        %v482 = vld [vmem:[%s3 + $0x20] sm:$0x1]
        %v483 = vld [vmem:[%s3 + $0x28] sm:$0x1]
        %v484 = vld [vmem:[%s6] sm:$0xff]
        %v485 = vld [vmem:[%s6 + $0x8] sm:$0xff]
        %v486 = vld [vmem:[%s6 + $0x10] sm:$0x7]
        %v487 = vld [vmem:[%s6 + $0x18] sm:$0x7]
        %v488 = vld [vmem:[%s7] sm:$0xff]
        %v489 = vld [vmem:[%s7 + $0x8] sm:$0xff]
        %v490 = vld [vmem:[%s7 + $0x10] sm:$0xff]
        %v491 = vld [vmem:[%s7 + $0x18] sm:$0xff]
        %v492 = vld [vmem:[%s7 + $0x20] sm:$0xff]
        %v493 = vld [vmem:[%s7 + $0x28] sm:$0xff]
        %v494 = vld [vmem:[%s7 + $0x30] sm:$0xff]
        %v495 = vld [vmem:[%s7 + $0x38] sm:$0xff]
        %v496 = vld [vmem:[%s7 + $0x40] sm:$0xff]
        %v497 = vld [vmem:[%s7 + $0x48] sm:$0xff]
        %v498 = vld [vmem:[%s7 + $0x50] sm:$0xff]
        %v499 = vld [vmem:[%s7 + $0x58] sm:$0xff]
        %v500 = vld [vmem:[%s7 + $0x60] sm:$0xff]
        %v501 = vld [vmem:[%s7 + $0x68] sm:$0xff]
        %v502 = vld [vmem:[%s7 + $0x70] sm:$0xff]
        %v503 = vld [vmem:[%s7 + $0x78] sm:$0xff]
        %v504 = vld [vmem:[%s7 + $0x80] sm:$0xff]
        %v505 = vld [vmem:[%s7 + $0x88] sm:$0xff]
        %v506 = vld [vmem:[%s7 + $0x90] sm:$0xff]
        %v507 = vld [vmem:[%s7 + $0x98] sm:$0xff]
        %v508 = vld [vmem:[%s8] sm:$0xff]
        %v509 = vld [vmem:[%s8 + $0x8] sm:$0x3]
        %v510 = vld [vmem:[%s9] sm:$0xff]
        %v511 = vld [vmem:[%s9 + $0x8] sm:$0xff]
        %v512 = vld [vmem:[%s9 + $0x10] sm:$0xff]
        %v513 = vld [vmem:[%s9 + $0x18] sm:$0xff]
        %v514 = vld [vmem:[%s9 + $0x20] sm:$0xff]
        %v515 = vld [vmem:[%s9 + $0x28] sm:$0xff]
        %v516 = vld [vmem:[%s9 + $0x30] sm:$0xff]
        %v517 = vld [vmem:[%s9 + $0x38] sm:$0xff]
        %v518 = vld [vmem:[%s9 + $0x40] sm:$0xff]
        %v519 = vld [vmem:[%s9 + $0x48] sm:$0xff]
        %v520 = vld [vmem:[%s9 + $0x50] sm:$0xff]
        %v521 = vld [vmem:[%s9 + $0x58] sm:$0xff]
        %v522 = vld [vmem:[%s9 + $0x60] sm:$0xf]
        %v523 = vld [vmem:[%s10] sm:$0x1]
        %v524 = vld [vmem:[%s383] sm:$0xff]
        %v525 = vld [vmem:[%s383 + $0x8] sm:$0xff]
        %v526 = vld [vmem:[%s383 + $0x10] sm:$0xff]
        %v527 = vld [vmem:[%s383 + $0x18] sm:$0xf]
        %vm528 = vcmask 228352
        %v530 = vsel %vm528, %v384, 0
        %v533 = vsel %vm528, %v385, 0
        %v536 = vsel %vm528, %v386, 0
        %vm538 = vcmask 1043456
        %v540 = vsel %vm538, %v527, 0
        %542 = vmatprep.subr.mxu0 0.0
        %543 = vmatpush1.msra.mxu0 0.0
        %544 = vmatprep.subr.mxu0 0.0
        %545 = vmatpush1.msra.mxu0 0.0
        %546 = vmatprep.subr.mxu0 0.0
        %547 = vmatpush1.msra.mxu0 0.0
        %548 = vmatprep.subr.mxu0 0.0
        %549 = vmatpush1.msra.mxu0 0.0
        %550 = vmatprep.subr.mxu0 0.0
        %551 = vmatpush1.msra.mxu0 0.0
        %552 = vmatprep.subr.mxu0 0.0
        %553 = vmatpush1.msra.mxu0 0.0
        %554 = vmatprep.subr.mxu0 0.0
        %555 = vmatpush1.msra.mxu0 0.0
        %556 = vmatprep.subr.mxu0 0.0
        %557 = vmatpush1.msra.mxu0 0.0
        %558 = vmatprep.subr.mxu0 0.0
        %559 = vmatpush1.msra.mxu0 0.0
        %560 = vmatprep.subr.mxu0 0.0
        %561 = vmatpush1.msra.mxu0 0.0
        %562 = vmatprep.subr.mxu0 0.0
        %563 = vmatpush1.msra.mxu0 0.0
        %564 = vmatprep.subr.mxu0 0.0
        %565 = vmatpush1.msra.mxu0 0.0
        %566 = vmatprep.subr.mxu0 0.0
        %567 = vmatpush1.msra.mxu0 %v540
        %568 = vmatprep.subr.mxu0 0.0
        %569 = vmatpush1.msra.mxu0 %v526
        %570 = vmatprep.subr.mxu0 0.0
        %571 = vmatpush1.msra.mxu0 %v525
        %572 = vmatprep.subr.mxu0 0.0
        %573 = vmatpush1.msra.mxu0 %v524
        %574 = vmatprep.subr.mxu0 0.0
        %575 = vmatpush2.msra.mxu0 0.0
        %576 = vmatprep.subr.mxu0 0.0
        %577 = vmatpush2.msra.mxu0 0.0
        %578 = vmatprep.subr.mxu0 0.0
        %579 = vmatpush2.msra.mxu0 0.0
        %580 = vmatprep.subr.mxu0 0.0
        %581 = vmatpush2.msra.mxu0 0.0
        %582 = vmatprep.subr.mxu0 0.0
        %583 = vmatpush2.msra.mxu0 0.0
        %584 = vmatprep.subr.mxu0 0.0
        %585 = vmatpush2.msra.mxu0 0.0
        %586 = vmatprep.subr.mxu0 0.0
        %587 = vmatpush2.msra.mxu0 0.0
        %588 = vmatprep.subr.mxu0 0.0
        %589 = vmatpush2.msra.mxu0 0.0
        %590 = vmatprep.subr.mxu0 0.0
        %591 = vmatpush2.msra.mxu0 0.0
        %592 = vmatprep.subr.mxu0 0.0
        %593 = vmatpush2.msra.mxu0 0.0
        %594 = vmatprep.subr.mxu0 0.0
        %595 = vmatpush2.msra.mxu0 0.0
        %596 = vmatprep.subr.mxu0 0.0
        %597 = vmatpush2.msra.mxu0 0.0
        %598 = vmatprep.subr.mxu0 0.0
        %599 = vmatpush2.msra.mxu0 0.0
        %600 = vmatprep.subr.mxu0 0.0
        %601 = vmatpush2.msra.mxu0 0.0
        %602 = vmatprep.subr.mxu0 0.0
        %603 = vmatpush2.msra.mxu0 0.0
        %604 = vmatprep.subr.mxu0 0.0
        %605 = vmatpush2.msra.mxu0 0.0
        %606 = vmatprep.mubr.f32.mxu0 0.0
        %607 = vmatmul.mubr.f32.gmra.mxu0 %v530
        %v608 = vpop.f32.mrf.mxu0
        %v609 = vadd.f32 0.0, %v608
        %v610 = vpop.f32.mrf.mxu0
        %611 = vmatprep.mubr.f32.mxu0 0.0
        %612 = vmatmul.mubr.f32.gmra.mxu0 %v533
        %v613 = vpop.f32.mrf.mxu0
        %v614 = vadd.f32 0.0, %v613
        %v615 = vpop.f32.mrf.mxu0
        %616 = vmatprep.mubr.f32.mxu0 0.0
        %617 = vmatmul.mubr.f32.gmra.mxu0 %v536
        %v618 = vpop.f32.mrf.mxu0
        %v619 = vadd.f32 0.0, %v618
        %v620 = vpop.f32.mrf.mxu0
        %621 = vdwg.mxu0
        %v623 = vsel %vm528, %v388, 0
        %v626 = vsel %vm528, %v389, 0
        %v629 = vsel %vm528, %v390, 0
        %631 = vmatprep.subr.mxu0 0.0
        %632 = vmatpush1.msra.mxu0 0.0
        %633 = vmatprep.subr.mxu0 0.0
        %634 = vmatpush1.msra.mxu0 0.0
        %635 = vmatprep.subr.mxu0 0.0
        %636 = vmatpush1.msra.mxu0 0.0
        %637 = vmatprep.subr.mxu0 0.0
        %638 = vmatpush1.msra.mxu0 0.0
        %639 = vmatprep.subr.mxu0 0.0
        %640 = vmatpush1.msra.mxu0 0.0
        %641 = vmatprep.subr.mxu0 0.0
        %642 = vmatpush1.msra.mxu0 0.0
        %643 = vmatprep.subr.mxu0 0.0
        %644 = vmatpush1.msra.mxu0 0.0
        %645 = vmatprep.subr.mxu0 0.0
        %646 = vmatpush1.msra.mxu0 0.0
        %647 = vmatprep.subr.mxu0 0.0
        %648 = vmatpush1.msra.mxu0 0.0
        %649 = vmatprep.subr.mxu0 0.0
        %650 = vmatpush1.msra.mxu0 0.0
        %651 = vmatprep.subr.mxu0 0.0
        %652 = vmatpush1.msra.mxu0 0.0
        %653 = vmatprep.subr.mxu0 0.0
        %654 = vmatpush1.msra.mxu0 0.0
        %655 = vmatprep.subr.mxu0 0.0
        %656 = vmatpush1.msra.mxu0 %v540
        %657 = vmatprep.subr.mxu0 0.0
        %658 = vmatpush1.msra.mxu0 %v526
        %659 = vmatprep.subr.mxu0 0.0
        %660 = vmatpush1.msra.mxu0 %v525
        %661 = vmatprep.subr.mxu0 0.0
        %662 = vmatpush1.msra.mxu0 %v524
        %663 = vmatprep.subr.mxu0 0.0
        %664 = vmatpush2.msra.mxu0 0.0
        %665 = vmatprep.subr.mxu0 0.0
        %666 = vmatpush2.msra.mxu0 0.0
        %667 = vmatprep.subr.mxu0 0.0
        %668 = vmatpush2.msra.mxu0 0.0
        %669 = vmatprep.subr.mxu0 0.0
        %670 = vmatpush2.msra.mxu0 0.0
        %671 = vmatprep.subr.mxu0 0.0
        %672 = vmatpush2.msra.mxu0 0.0
        %673 = vmatprep.subr.mxu0 0.0
        %674 = vmatpush2.msra.mxu0 0.0
        %675 = vmatprep.subr.mxu0 0.0
        %676 = vmatpush2.msra.mxu0 0.0
        %677 = vmatprep.subr.mxu0 0.0
        %678 = vmatpush2.msra.mxu0 0.0
        %679 = vmatprep.subr.mxu0 0.0
        %680 = vmatpush2.msra.mxu0 0.0
        %681 = vmatprep.subr.mxu0 0.0
        %682 = vmatpush2.msra.mxu0 0.0
        %683 = vmatprep.subr.mxu0 0.0
        %684 = vmatpush2.msra.mxu0 0.0
        %685 = vmatprep.subr.mxu0 0.0
        %686 = vmatpush2.msra.mxu0 0.0
        %687 = vmatprep.subr.mxu0 0.0
        %688 = vmatpush2.msra.mxu0 0.0
        %689 = vmatprep.subr.mxu0 0.0
        %690 = vmatpush2.msra.mxu0 0.0
        %691 = vmatprep.subr.mxu0 0.0
        %692 = vmatpush2.msra.mxu0 0.0
        %693 = vmatprep.subr.mxu0 0.0
        %694 = vmatpush2.msra.mxu0 0.0
        %695 = vmatprep.mubr.f32.mxu0 0.0
        %696 = vmatmul.mubr.f32.gmra.mxu0 %v623
        %v697 = vpop.f32.mrf.mxu0
        %v698 = vadd.f32 0.0, %v697
        %v699 = vpop.f32.mrf.mxu0
        %700 = vmatprep.mubr.f32.mxu0 0.0
        %701 = vmatmul.mubr.f32.gmra.mxu0 %v626
        %v702 = vpop.f32.mrf.mxu0
        %v703 = vadd.f32 0.0, %v702
        %v704 = vpop.f32.mrf.mxu0
        %705 = vmatprep.mubr.f32.mxu0 0.0
        %706 = vmatmul.mubr.f32.gmra.mxu0 %v629
        %v707 = vpop.f32.mrf.mxu0
        %v708 = vadd.f32 0.0, %v707
        %v709 = vpop.f32.mrf.mxu0
        %710 = vdwg.mxu0
        %v712 = vsel %vm528, %v698, 0
        %v715 = vsel %vm528, %v703, 0
        %v718 = vsel %vm528, %v708, 0
        %v721 = vsel %vm538, %v406, 0
        %v724 = vsel %vm538, %v407, 0
        %726 = vmatprep.subr.mxu0 0.0
        %727 = vmatpush1.msra.mxu0 0.0
        %728 = vmatprep.subr.mxu0 0.0
        %729 = vmatpush1.msra.mxu0 0.0
        %730 = vmatprep.subr.mxu0 0.0
        %731 = vmatpush1.msra.mxu0 0.0
        %732 = vmatprep.subr.mxu0 0.0
        %733 = vmatpush1.msra.mxu0 0.0
        %734 = vmatprep.subr.mxu0 0.0
        %735 = vmatpush1.msra.mxu0 0.0
        %736 = vmatprep.subr.mxu0 0.0
        %737 = vmatpush1.msra.mxu0 0.0
        %738 = vmatprep.subr.mxu0 0.0
        %739 = vmatpush1.msra.mxu0 0.0
        %740 = vmatprep.subr.mxu0 0.0
        %741 = vmatpush1.msra.mxu0 0.0
        %742 = vmatprep.subr.mxu0 0.0
        %743 = vmatpush1.msra.mxu0 0.0
        %744 = vmatprep.subr.mxu0 0.0
        %745 = vmatpush1.msra.mxu0 0.0
        %746 = vmatprep.subr.mxu0 0.0
        %747 = vmatpush1.msra.mxu0 0.0
        %748 = vmatprep.subr.mxu0 0.0
        %749 = vmatpush1.msra.mxu0 0.0
        %750 = vmatprep.subr.mxu0 %v724
        %751 = vmatpush1.msra.mxu0 %v721
        %752 = vmatprep.subr.mxu0 %v405
        %753 = vmatpush1.msra.mxu0 %v404
        %754 = vmatprep.subr.mxu0 %v403
        %755 = vmatpush1.msra.mxu0 %v402
        %756 = vmatprep.subr.mxu0 %v401
        %757 = vmatpush1.msra.mxu0 %v400
        %758 = vmatprep.subr.mxu0 0.0
        %759 = vmatpush2.msra.mxu0 0.0
        %760 = vmatprep.subr.mxu0 0.0
        %761 = vmatpush2.msra.mxu0 0.0
        %762 = vmatprep.subr.mxu0 0.0
        %763 = vmatpush2.msra.mxu0 0.0
        %764 = vmatprep.subr.mxu0 0.0
        %765 = vmatpush2.msra.mxu0 0.0
        %766 = vmatprep.subr.mxu0 0.0
        %767 = vmatpush2.msra.mxu0 0.0
        %768 = vmatprep.subr.mxu0 0.0
        %769 = vmatpush2.msra.mxu0 0.0
        %770 = vmatprep.subr.mxu0 0.0
        %771 = vmatpush2.msra.mxu0 0.0
        %772 = vmatprep.subr.mxu0 0.0
        %773 = vmatpush2.msra.mxu0 0.0
        %774 = vmatprep.subr.mxu0 0.0
        %775 = vmatpush2.msra.mxu0 0.0
        %776 = vmatprep.subr.mxu0 0.0
        %777 = vmatpush2.msra.mxu0 0.0
        %778 = vmatprep.subr.mxu0 0.0
        %779 = vmatpush2.msra.mxu0 0.0
        %780 = vmatprep.subr.mxu0 0.0
        %781 = vmatpush2.msra.mxu0 0.0
        %782 = vmatprep.subr.mxu0 0.0
        %783 = vmatpush2.msra.mxu0 0.0
        %784 = vmatprep.subr.mxu0 0.0
        %785 = vmatpush2.msra.mxu0 0.0
        %786 = vmatprep.subr.mxu0 0.0
        %787 = vmatpush2.msra.mxu0 0.0
        %788 = vmatprep.subr.mxu0 0.0
        %789 = vmatpush2.msra.mxu0 0.0
        %790 = vmatprep.mubr.f32.mxu0 0.0
        %791 = vmatmul.mubr.f32.gmra.mxu0 %v712
        %v792 = vpop.f32.mrf.mxu0
        %v793 = vadd.f32 0.0, %v792
        %v794 = vpop.f32.mrf.mxu0
        %v795 = vadd.f32 0.0, %v794
        %796 = vmatprep.mubr.f32.mxu0 0.0
        %797 = vmatmul.mubr.f32.gmra.mxu0 %v715
        %v798 = vpop.f32.mrf.mxu0
        %v799 = vadd.f32 0.0, %v798
        %v800 = vpop.f32.mrf.mxu0
        %v801 = vadd.f32 0.0, %v800
        %802 = vmatprep.mubr.f32.mxu0 0.0
        %803 = vmatmul.mubr.f32.gmra.mxu0 %v718
        %v804 = vpop.f32.mrf.mxu0
        %v805 = vadd.f32 0.0, %v804
        %v806 = vpop.f32.mrf.mxu0
        %v807 = vadd.f32 0.0, %v806
        %808 = vdwg.mxu0
        %v810 = vsel %vm528, %v609, 0
        %v813 = vsel %vm528, %v614, 0
        %v816 = vsel %vm528, %v619, 0
        %v819 = vsel %vm538, %v397, 0
        %v822 = vsel %vm538, %v398, 0
        %824 = vmatprep.subr.mxu0 0.0
        %825 = vmatpush1.msra.mxu0 0.0
        %826 = vmatprep.subr.mxu0 0.0
        %827 = vmatpush1.msra.mxu0 0.0
        %828 = vmatprep.subr.mxu0 0.0
        %829 = vmatpush1.msra.mxu0 0.0
        %830 = vmatprep.subr.mxu0 0.0
        %831 = vmatpush1.msra.mxu0 0.0
        %832 = vmatprep.subr.mxu0 0.0
        %833 = vmatpush1.msra.mxu0 0.0
        %834 = vmatprep.subr.mxu0 0.0
        %835 = vmatpush1.msra.mxu0 0.0
        %836 = vmatprep.subr.mxu0 0.0
        %837 = vmatpush1.msra.mxu0 0.0
        %838 = vmatprep.subr.mxu0 0.0
        %839 = vmatpush1.msra.mxu0 0.0
        %840 = vmatprep.subr.mxu0 0.0
        %841 = vmatpush1.msra.mxu0 0.0
        %842 = vmatprep.subr.mxu0 0.0
        %843 = vmatpush1.msra.mxu0 0.0
        %844 = vmatprep.subr.mxu0 0.0
        %845 = vmatpush1.msra.mxu0 0.0
        %846 = vmatprep.subr.mxu0 0.0
        %847 = vmatpush1.msra.mxu0 0.0
        %848 = vmatprep.subr.mxu0 %v822
        %849 = vmatpush1.msra.mxu0 %v819
        %850 = vmatprep.subr.mxu0 %v396
        %851 = vmatpush1.msra.mxu0 %v395
        %852 = vmatprep.subr.mxu0 %v394
        %853 = vmatpush1.msra.mxu0 %v393
        %854 = vmatprep.subr.mxu0 %v392
        %855 = vmatpush1.msra.mxu0 %v391
        %856 = vmatprep.subr.mxu0 0.0
        %857 = vmatpush2.msra.mxu0 0.0
        %858 = vmatprep.subr.mxu0 0.0
        %859 = vmatpush2.msra.mxu0 0.0
        %860 = vmatprep.subr.mxu0 0.0
        %861 = vmatpush2.msra.mxu0 0.0
        %862 = vmatprep.subr.mxu0 0.0
        %863 = vmatpush2.msra.mxu0 0.0
        %864 = vmatprep.subr.mxu0 0.0
        %865 = vmatpush2.msra.mxu0 0.0
        %866 = vmatprep.subr.mxu0 0.0
        %867 = vmatpush2.msra.mxu0 0.0
        %868 = vmatprep.subr.mxu0 0.0
        %869 = vmatpush2.msra.mxu0 0.0
        %870 = vmatprep.subr.mxu0 0.0
        %871 = vmatpush2.msra.mxu0 0.0
        %872 = vmatprep.subr.mxu0 0.0
        %873 = vmatpush2.msra.mxu0 0.0
        %874 = vmatprep.subr.mxu0 0.0
        %875 = vmatpush2.msra.mxu0 0.0
        %876 = vmatprep.subr.mxu0 0.0
        %877 = vmatpush2.msra.mxu0 0.0
        %878 = vmatprep.subr.mxu0 0.0
        %879 = vmatpush2.msra.mxu0 0.0
        %880 = vmatprep.subr.mxu0 0.0
        %881 = vmatpush2.msra.mxu0 0.0
        %882 = vmatprep.subr.mxu0 0.0
        %883 = vmatpush2.msra.mxu0 0.0
        %884 = vmatprep.subr.mxu0 0.0
        %885 = vmatpush2.msra.mxu0 0.0
        %886 = vmatprep.subr.mxu0 0.0
        %887 = vmatpush2.msra.mxu0 0.0
        %888 = vmatprep.mubr.f32.mxu0 0.0
        %889 = vmatmul.mubr.f32.gmra.mxu0 %v810
        %v890 = vpop.f32.mrf.mxu0
        %v891 = vadd.f32 %v793, %v890
        %v892 = vpop.f32.mrf.mxu0
        %v893 = vadd.f32 %v795, %v892
        %894 = vmatprep.mubr.f32.mxu0 0.0
        %895 = vmatmul.mubr.f32.gmra.mxu0 %v813
        %v896 = vpop.f32.mrf.mxu0
        %v897 = vadd.f32 %v799, %v896
        %v898 = vpop.f32.mrf.mxu0
        %v899 = vadd.f32 %v801, %v898
        %900 = vmatprep.mubr.f32.mxu0 0.0
        %901 = vmatmul.mubr.f32.gmra.mxu0 %v816
        %v902 = vpop.f32.mrf.mxu0
        %v903 = vadd.f32 %v805, %v902
        %v904 = vpop.f32.mrf.mxu0
        %v905 = vadd.f32 %v807, %v904
        %906 = vdwg.mxu0
        %v907 = vadd.f32 %v891, %v478
        %v908 = vadd.f32 %v893, %v479
        %v909 = vadd.f32 %v897, %v480
        %v910 = vadd.f32 %v899, %v481
        %v911 = vadd.f32 %v903, %v482
        %v912 = vadd.f32 %v905, %v483
        %v913 = vmax.f32 %v907, 0.0
        %v914 = vmax.f32 %v908, 0.0
        %v915 = vmax.f32 %v909, 0.0
        %v916 = vmax.f32 %v910, 0.0
        %v917 = vmax.f32 %v911, 0.0
        %v918 = vmax.f32 %v912, 0.0
        %925 = vrot.lane.b32.xlu0 %v913, 120
        %v926 = vpop.permute.xlu0 %925
        %927 = vrot.lane.b32.xlu0 %v914, 120
        %v928 = vpop.permute.xlu0 %927
        %929 = vrot.lane.b32.xlu0 %v915, 120
        %v930 = vpop.permute.xlu0 %929
        %931 = vrot.lane.b32.xlu0 %v916, 120
        %v932 = vpop.permute.xlu0 %931
        %933 = vrot.lane.b32.xlu0 %v917, 120
        %v934 = vpop.permute.xlu0 %933
        %935 = vrot.lane.b32.xlu0 %v918, 120
        %v936 = vpop.permute.xlu0 %935
        %vm937 = vcmask 982016
        %v938 = vsel %vm937, %v926, %v928
        %v939 = vsel %vm937, %v930, %v932
        %v940 = vsel %vm937, %v934, %v936
        %v944 = vmax.f32 %v913, %v938
        %v945 = vmax.f32 %v915, %v939
        %v946 = vmax.f32 %v917, %v940
        %vm950 = vcmask 1046528
        %v951 = vrot.slane %v944, 1
        %v952 = vrot.slane %v945, 1
        %v953 = vsel %vm950, %v951, %v952
        %v954 = vrot.slane %v946, 1
        %v955 = vsel %vm950, %v952, %v954
        %v958 = vmax.f32 %v944, %v953
        %v959 = vmax.f32 %v945, %v955
        %vm960 = vcmask 130048
        %v962 = vsel %vm960, %v408, 0
        %v965 = vsel %vm960, %v409, 0
        %967 = vmatprep.subr.mxu0 0.0
        %968 = vmatpush1.msra.mxu0 0.0
        %969 = vmatprep.subr.mxu0 0.0
        %970 = vmatpush1.msra.mxu0 0.0
        %971 = vmatprep.subr.mxu0 0.0
        %972 = vmatpush1.msra.mxu0 0.0
        %973 = vmatprep.subr.mxu0 0.0
        %974 = vmatpush1.msra.mxu0 0.0
        %975 = vmatprep.subr.mxu0 0.0
        %976 = vmatpush1.msra.mxu0 0.0
        %977 = vmatprep.subr.mxu0 0.0
        %978 = vmatpush1.msra.mxu0 0.0
        %979 = vmatprep.subr.mxu0 0.0
        %980 = vmatpush1.msra.mxu0 0.0
        %981 = vmatprep.subr.mxu0 0.0
        %982 = vmatpush1.msra.mxu0 0.0
        %983 = vmatprep.subr.mxu0 0.0
        %984 = vmatpush1.msra.mxu0 0.0
        %985 = vmatprep.subr.mxu0 0.0
        %986 = vmatpush1.msra.mxu0 0.0
        %987 = vmatprep.subr.mxu0 0.0
        %988 = vmatpush1.msra.mxu0 0.0
        %989 = vmatprep.subr.mxu0 0.0
        %990 = vmatpush1.msra.mxu0 0.0
        %991 = vmatprep.subr.mxu0 0.0
        %992 = vmatpush1.msra.mxu0 0.0
        %993 = vmatprep.subr.mxu0 0.0
        %994 = vmatpush1.msra.mxu0 0.0
        %995 = vmatprep.subr.mxu0 0.0
        %996 = vmatpush1.msra.mxu0 %v959
        %997 = vmatprep.subr.mxu0 0.0
        %998 = vmatpush1.msra.mxu0 %v958
        %999 = vmatprep.subr.mxu0 0.0
        %1000 = vmatpush2.msra.mxu0 0.0
        %1001 = vmatprep.subr.mxu0 0.0
        %1002 = vmatpush2.msra.mxu0 0.0
        %1003 = vmatprep.subr.mxu0 0.0
        %1004 = vmatpush2.msra.mxu0 0.0
        %1005 = vmatprep.subr.mxu0 0.0
        %1006 = vmatpush2.msra.mxu0 0.0
        %1007 = vmatprep.subr.mxu0 0.0
        %1008 = vmatpush2.msra.mxu0 0.0
        %1009 = vmatprep.subr.mxu0 0.0
        %1010 = vmatpush2.msra.mxu0 0.0
        %1011 = vmatprep.subr.mxu0 0.0
        %1012 = vmatpush2.msra.mxu0 0.0
        %1013 = vmatprep.subr.mxu0 0.0
        %1014 = vmatpush2.msra.mxu0 0.0
        %1015 = vmatprep.subr.mxu0 0.0
        %1016 = vmatpush2.msra.mxu0 0.0
        %1017 = vmatprep.subr.mxu0 0.0
        %1018 = vmatpush2.msra.mxu0 0.0
        %1019 = vmatprep.subr.mxu0 0.0
        %1020 = vmatpush2.msra.mxu0 0.0
        %1021 = vmatprep.subr.mxu0 0.0
        %1022 = vmatpush2.msra.mxu0 0.0
        %1023 = vmatprep.subr.mxu0 0.0
        %1024 = vmatpush2.msra.mxu0 0.0
        %1025 = vmatprep.subr.mxu0 0.0
        %1026 = vmatpush2.msra.mxu0 0.0
        %1027 = vmatprep.subr.mxu0 0.0
        %1028 = vmatpush2.msra.mxu0 0.0
        %1029 = vmatprep.subr.mxu0 0.0
        %1030 = vmatpush2.msra.mxu0 0.0
        %1031 = vmatprep.mubr.f32.mxu0 0.0
        %1032 = vmatmul.mubr.f32.gmra.mxu0 %v962
        %v1033 = vpop.f32.mrf.mxu0
        %v1034 = vadd.f32 0.0, %v1033
        %v1035 = vpop.f32.mrf.mxu0
        %1036 = vmatprep.mubr.f32.mxu0 0.0
        %1037 = vmatmul.mubr.f32.gmra.mxu0 %v965
        %v1038 = vpop.f32.mrf.mxu0
        %v1039 = vadd.f32 0.0, %v1038
        %v1040 = vpop.f32.mrf.mxu0
        %1041 = vdwg.mxu0
        %v1043 = vsel %vm960, %v411, 0
        %v1046 = vsel %vm960, %v412, 0
        %1048 = vmatprep.subr.mxu0 0.0
        %1049 = vmatpush1.msra.mxu0 0.0
        %1050 = vmatprep.subr.mxu0 0.0
        %1051 = vmatpush1.msra.mxu0 0.0
        %1052 = vmatprep.subr.mxu0 0.0
        %1053 = vmatpush1.msra.mxu0 0.0
        %1054 = vmatprep.subr.mxu0 0.0
        %1055 = vmatpush1.msra.mxu0 0.0
        %1056 = vmatprep.subr.mxu0 0.0
        %1057 = vmatpush1.msra.mxu0 0.0
        %1058 = vmatprep.subr.mxu0 0.0
        %1059 = vmatpush1.msra.mxu0 0.0
        %1060 = vmatprep.subr.mxu0 0.0
        %1061 = vmatpush1.msra.mxu0 0.0
        %1062 = vmatprep.subr.mxu0 0.0
        %1063 = vmatpush1.msra.mxu0 0.0
        %1064 = vmatprep.subr.mxu0 0.0
        %1065 = vmatpush1.msra.mxu0 0.0
        %1066 = vmatprep.subr.mxu0 0.0
        %1067 = vmatpush1.msra.mxu0 0.0
        %1068 = vmatprep.subr.mxu0 0.0
        %1069 = vmatpush1.msra.mxu0 0.0
        %1070 = vmatprep.subr.mxu0 0.0
        %1071 = vmatpush1.msra.mxu0 0.0
        %1072 = vmatprep.subr.mxu0 0.0
        %1073 = vmatpush1.msra.mxu0 0.0
        %1074 = vmatprep.subr.mxu0 0.0
        %1075 = vmatpush1.msra.mxu0 0.0
        %1076 = vmatprep.subr.mxu0 0.0
        %1077 = vmatpush1.msra.mxu0 %v959
        %1078 = vmatprep.subr.mxu0 0.0
        %1079 = vmatpush1.msra.mxu0 %v958
        %1080 = vmatprep.subr.mxu0 0.0
        %1081 = vmatpush2.msra.mxu0 0.0
        %1082 = vmatprep.subr.mxu0 0.0
        %1083 = vmatpush2.msra.mxu0 0.0
        %1084 = vmatprep.subr.mxu0 0.0
        %1085 = vmatpush2.msra.mxu0 0.0
        %1086 = vmatprep.subr.mxu0 0.0
        %1087 = vmatpush2.msra.mxu0 0.0
        %1088 = vmatprep.subr.mxu0 0.0
        %1089 = vmatpush2.msra.mxu0 0.0
        %1090 = vmatprep.subr.mxu0 0.0
        %1091 = vmatpush2.msra.mxu0 0.0
        %1092 = vmatprep.subr.mxu0 0.0
        %1093 = vmatpush2.msra.mxu0 0.0
        %1094 = vmatprep.subr.mxu0 0.0
        %1095 = vmatpush2.msra.mxu0 0.0
        %1096 = vmatprep.subr.mxu0 0.0
        %1097 = vmatpush2.msra.mxu0 0.0
        %1098 = vmatprep.subr.mxu0 0.0
        %1099 = vmatpush2.msra.mxu0 0.0
        %1100 = vmatprep.subr.mxu0 0.0
        %1101 = vmatpush2.msra.mxu0 0.0
        %1102 = vmatprep.subr.mxu0 0.0
        %1103 = vmatpush2.msra.mxu0 0.0
        %1104 = vmatprep.subr.mxu0 0.0
        %1105 = vmatpush2.msra.mxu0 0.0
        %1106 = vmatprep.subr.mxu0 0.0
        %1107 = vmatpush2.msra.mxu0 0.0
        %1108 = vmatprep.subr.mxu0 0.0
        %1109 = vmatpush2.msra.mxu0 0.0
        %1110 = vmatprep.subr.mxu0 0.0
        %1111 = vmatpush2.msra.mxu0 0.0
        %1112 = vmatprep.mubr.f32.mxu0 0.0
        %1113 = vmatmul.mubr.f32.gmra.mxu0 %v1043
        %v1114 = vpop.f32.mrf.mxu0
        %v1115 = vadd.f32 0.0, %v1114
        %v1116 = vpop.f32.mrf.mxu0
        %1117 = vmatprep.mubr.f32.mxu0 0.0
        %1118 = vmatmul.mubr.f32.gmra.mxu0 %v1046
        %v1119 = vpop.f32.mrf.mxu0
        %v1120 = vadd.f32 0.0, %v1119
        %v1121 = vpop.f32.mrf.mxu0
        %1122 = vdwg.mxu0
        %1123 = vmatprep.subr.mxu0 %v477
        %1124 = vmatpush1.msra.mxu0 %v476
        %1125 = vmatprep.subr.mxu0 %v475
        %1126 = vmatpush1.msra.mxu0 %v474
        %1127 = vmatprep.subr.mxu0 %v473
        %1128 = vmatpush1.msra.mxu0 %v472
        %1129 = vmatprep.subr.mxu0 %v471
        %1130 = vmatpush1.msra.mxu0 %v470
        %1131 = vmatprep.subr.mxu0 %v469
        %1132 = vmatpush1.msra.mxu0 %v468
        %1133 = vmatprep.subr.mxu0 %v467
        %1134 = vmatpush1.msra.mxu0 %v466
        %1135 = vmatprep.subr.mxu0 %v465
        %1136 = vmatpush1.msra.mxu0 %v464
        %1137 = vmatprep.subr.mxu0 %v463
        %1138 = vmatpush1.msra.mxu0 %v462
        %1139 = vmatprep.subr.mxu0 %v461
        %1140 = vmatpush1.msra.mxu0 %v460
        %1141 = vmatprep.subr.mxu0 %v459
        %1142 = vmatpush1.msra.mxu0 %v458
        %1143 = vmatprep.subr.mxu0 %v457
        %1144 = vmatpush1.msra.mxu0 %v456
        %1145 = vmatprep.subr.mxu0 %v455
        %1146 = vmatpush1.msra.mxu0 %v454
        %1147 = vmatprep.subr.mxu0 %v453
        %1148 = vmatpush1.msra.mxu0 %v452
        %1149 = vmatprep.subr.mxu0 %v451
        %1150 = vmatpush1.msra.mxu0 %v450
        %1151 = vmatprep.subr.mxu0 %v449
        %1152 = vmatpush1.msra.mxu0 %v448
        %1153 = vmatprep.subr.mxu0 %v447
        %1154 = vmatpush1.msra.mxu0 %v446
        %1155 = vmatprep.subr.mxu0 0.0
        %1156 = vmatpush2.msra.mxu0 0.0
        %1157 = vmatprep.subr.mxu0 0.0
        %1158 = vmatpush2.msra.mxu0 0.0
        %1159 = vmatprep.subr.mxu0 0.0
        %1160 = vmatpush2.msra.mxu0 0.0
        %1161 = vmatprep.subr.mxu0 0.0
        %1162 = vmatpush2.msra.mxu0 0.0
        %1163 = vmatprep.subr.mxu0 0.0
        %1164 = vmatpush2.msra.mxu0 0.0
        %1165 = vmatprep.subr.mxu0 0.0
        %1166 = vmatpush2.msra.mxu0 0.0
        %1167 = vmatprep.subr.mxu0 0.0
        %1168 = vmatpush2.msra.mxu0 0.0
        %1169 = vmatprep.subr.mxu0 0.0
        %1170 = vmatpush2.msra.mxu0 0.0
        %1171 = vmatprep.subr.mxu0 0.0
        %1172 = vmatpush2.msra.mxu0 0.0
        %1173 = vmatprep.subr.mxu0 0.0
        %1174 = vmatpush2.msra.mxu0 0.0
        %1175 = vmatprep.subr.mxu0 0.0
        %1176 = vmatpush2.msra.mxu0 0.0
        %1177 = vmatprep.subr.mxu0 0.0
        %1178 = vmatpush2.msra.mxu0 0.0
        %1179 = vmatprep.subr.mxu0 0.0
        %1180 = vmatpush2.msra.mxu0 0.0
        %1181 = vmatprep.subr.mxu0 0.0
        %1182 = vmatpush2.msra.mxu0 0.0
        %1183 = vmatprep.subr.mxu0 0.0
        %1184 = vmatpush2.msra.mxu0 0.0
        %1185 = vmatprep.subr.mxu0 0.0
        %1186 = vmatpush2.msra.mxu0 0.0
        %1187 = vmatprep.mubr.f32.mxu0 0.0
        %1188 = vmatmul.mubr.f32.gmra.mxu0 %v1115
        %v1189 = vpop.f32.mrf.mxu0
        %v1190 = vadd.f32 0.0, %v1189
        %v1191 = vpop.f32.mrf.mxu0
        %v1192 = vadd.f32 0.0, %v1191
        %1193 = vmatprep.mubr.f32.mxu0 0.0
        %1194 = vmatmul.mubr.f32.gmra.mxu0 %v1120
        %v1195 = vpop.f32.mrf.mxu0
        %v1196 = vadd.f32 0.0, %v1195
        %v1197 = vpop.f32.mrf.mxu0
        %v1198 = vadd.f32 0.0, %v1197
        %1199 = vdwg.mxu0
        %1200 = vmatprep.subr.mxu0 %v444
        %1201 = vmatpush1.msra.mxu0 %v443
        %1202 = vmatprep.subr.mxu0 %v442
        %1203 = vmatpush1.msra.mxu0 %v441
        %1204 = vmatprep.subr.mxu0 %v440
        %1205 = vmatpush1.msra.mxu0 %v439
        %1206 = vmatprep.subr.mxu0 %v438
        %1207 = vmatpush1.msra.mxu0 %v437
        %1208 = vmatprep.subr.mxu0 %v436
        %1209 = vmatpush1.msra.mxu0 %v435
        %1210 = vmatprep.subr.mxu0 %v434
        %1211 = vmatpush1.msra.mxu0 %v433
        %1212 = vmatprep.subr.mxu0 %v432
        %1213 = vmatpush1.msra.mxu0 %v431
        %1214 = vmatprep.subr.mxu0 %v430
        %1215 = vmatpush1.msra.mxu0 %v429
        %1216 = vmatprep.subr.mxu0 %v428
        %1217 = vmatpush1.msra.mxu0 %v427
        %1218 = vmatprep.subr.mxu0 %v426
        %1219 = vmatpush1.msra.mxu0 %v425
        %1220 = vmatprep.subr.mxu0 %v424
        %1221 = vmatpush1.msra.mxu0 %v423
        %1222 = vmatprep.subr.mxu0 %v422
        %1223 = vmatpush1.msra.mxu0 %v421
        %1224 = vmatprep.subr.mxu0 %v420
        %1225 = vmatpush1.msra.mxu0 %v419
        %1226 = vmatprep.subr.mxu0 %v418
        %1227 = vmatpush1.msra.mxu0 %v417
        %1228 = vmatprep.subr.mxu0 %v416
        %1229 = vmatpush1.msra.mxu0 %v415
        %1230 = vmatprep.subr.mxu0 %v414
        %1231 = vmatpush1.msra.mxu0 %v413
        %1232 = vmatprep.subr.mxu0 0.0
        %1233 = vmatpush2.msra.mxu0 0.0
        %1234 = vmatprep.subr.mxu0 0.0
        %1235 = vmatpush2.msra.mxu0 0.0
        %1236 = vmatprep.subr.mxu0 0.0
        %1237 = vmatpush2.msra.mxu0 0.0
        %1238 = vmatprep.subr.mxu0 0.0
        %1239 = vmatpush2.msra.mxu0 0.0
        %1240 = vmatprep.subr.mxu0 0.0
        %1241 = vmatpush2.msra.mxu0 0.0
        %1242 = vmatprep.subr.mxu0 0.0
        %1243 = vmatpush2.msra.mxu0 0.0
        %1244 = vmatprep.subr.mxu0 0.0
        %1245 = vmatpush2.msra.mxu0 0.0
        %1246 = vmatprep.subr.mxu0 0.0
        %1247 = vmatpush2.msra.mxu0 0.0
        %1248 = vmatprep.subr.mxu0 0.0
        %1249 = vmatpush2.msra.mxu0 0.0
        %1250 = vmatprep.subr.mxu0 0.0
        %1251 = vmatpush2.msra.mxu0 0.0
        %1252 = vmatprep.subr.mxu0 0.0
        %1253 = vmatpush2.msra.mxu0 0.0
        %1254 = vmatprep.subr.mxu0 0.0
        %1255 = vmatpush2.msra.mxu0 0.0
        %1256 = vmatprep.subr.mxu0 0.0
        %1257 = vmatpush2.msra.mxu0 0.0
        %1258 = vmatprep.subr.mxu0 0.0
        %1259 = vmatpush2.msra.mxu0 0.0
        %1260 = vmatprep.subr.mxu0 0.0
        %1261 = vmatpush2.msra.mxu0 0.0
        %1262 = vmatprep.subr.mxu0 0.0
        %1263 = vmatpush2.msra.mxu0 0.0
        %1264 = vmatprep.mubr.f32.mxu0 0.0
        %1265 = vmatmul.mubr.f32.gmra.mxu0 %v1034
        %v1266 = vpop.f32.mrf.mxu0
        %v1267 = vadd.f32 %v1190, %v1266
        %v1268 = vpop.f32.mrf.mxu0
        %v1269 = vadd.f32 %v1192, %v1268
        %1270 = vmatprep.mubr.f32.mxu0 0.0
        %1271 = vmatmul.mubr.f32.gmra.mxu0 %v1039
        %v1272 = vpop.f32.mrf.mxu0
        %v1273 = vadd.f32 %v1196, %v1272
        %v1274 = vpop.f32.mrf.mxu0
        %v1275 = vadd.f32 %v1198, %v1274
        %1276 = vdwg.mxu0
        %v1277 = vadd.f32 %v1267, %v484
        %v1278 = vadd.f32 %v1269, %v485
        %v1279 = vadd.f32 %v1273, %v486
        %v1280 = vadd.f32 %v1275, %v487
        %v1281 = vmax.f32 %v1277, 0.0
        %v1282 = vmax.f32 %v1278, 0.0
        %v1283 = vmax.f32 %v1279, 0.0
        %v1284 = vmax.f32 %v1280, 0.0
        %1289 = vrot.lane.b32.xlu0 %v1281, 112
        %v1290 = vpop.permute.xlu0 %1289
        %1291 = vrot.lane.b32.xlu0 %v1282, 112
        %v1292 = vpop.permute.xlu0 %1291
        %1293 = vrot.lane.b32.xlu0 %v1283, 112
        %v1294 = vpop.permute.xlu0 %1293
        %1295 = vrot.lane.b32.xlu0 %v1284, 112
        %v1296 = vpop.permute.xlu0 %1295
        %vm1297 = vcmask 916480
        %v1298 = vsel %vm1297, %v1290, %v1292
        %v1299 = vsel %vm1297, %v1294, %v1296
        %v1304 = vmax.f32 %v1281, %v1298
        %v1305 = vmax.f32 %v1282, %v1292
        %v1306 = vmax.f32 %v1283, %v1299
        %v1307 = vmax.f32 %v1284, %v1296
        %v1312 = vrot.slane %v1304, 1
        %v1313 = vrot.slane %v1306, 1
        %v1314 = vsel %vm950, %v1312, %v1313
        %v1315 = vrot.slane %v1305, 1
        %v1316 = vrot.slane %v1307, 1
        %v1317 = vsel %vm950, %v1315, %v1316
        %v1322 = vmax.f32 %v1304, %v1314
        %v1323 = vmax.f32 %v1305, %v1317
        %v1324 = vmax.f32 %v1306, %v1313
        %v1325 = vmax.f32 %v1307, %v1316
        %vm1326 = vcmask 261120
        %v1328 = vsel %vm1326, %v1323, 0
        %v1331 = vsel %vm1326, %v1325, 0
        %1333 = vmatprep.subr.mxu0 0.0
        %1334 = vmatpush1.msra.mxu0 %v503
        %1335 = vmatprep.subr.mxu0 0.0
        %1336 = vmatpush1.msra.mxu0 %v502
        %1337 = vmatprep.subr.mxu0 0.0
        %1338 = vmatpush1.msra.mxu0 %v501
        %1339 = vmatprep.subr.mxu0 0.0
        %1340 = vmatpush1.msra.mxu0 %v500
        %1341 = vmatprep.subr.mxu0 0.0
        %1342 = vmatpush1.msra.mxu0 %v499
        %1343 = vmatprep.subr.mxu0 0.0
        %1344 = vmatpush1.msra.mxu0 %v498
        %1345 = vmatprep.subr.mxu0 0.0
        %1346 = vmatpush1.msra.mxu0 %v497
        %1347 = vmatprep.subr.mxu0 0.0
        %1348 = vmatpush1.msra.mxu0 %v496
        %1349 = vmatprep.subr.mxu0 0.0
        %1350 = vmatpush1.msra.mxu0 %v495
        %1351 = vmatprep.subr.mxu0 0.0
        %1352 = vmatpush1.msra.mxu0 %v494
        %1353 = vmatprep.subr.mxu0 0.0
        %1354 = vmatpush1.msra.mxu0 %v493
        %1355 = vmatprep.subr.mxu0 0.0
        %1356 = vmatpush1.msra.mxu0 %v492
        %1357 = vmatprep.subr.mxu0 0.0
        %1358 = vmatpush1.msra.mxu0 %v491
        %1359 = vmatprep.subr.mxu0 0.0
        %1360 = vmatpush1.msra.mxu0 %v490
        %1361 = vmatprep.subr.mxu0 0.0
        %1362 = vmatpush1.msra.mxu0 %v489
        %1363 = vmatprep.subr.mxu0 0.0
        %1364 = vmatpush1.msra.mxu0 %v488
        %1365 = vmatprep.subr.mxu0 0.0
        %1366 = vmatpush2.msra.mxu0 0.0
        %1367 = vmatprep.subr.mxu0 0.0
        %1368 = vmatpush2.msra.mxu0 0.0
        %1369 = vmatprep.subr.mxu0 0.0
        %1370 = vmatpush2.msra.mxu0 0.0
        %1371 = vmatprep.subr.mxu0 0.0
        %1372 = vmatpush2.msra.mxu0 0.0
        %1373 = vmatprep.subr.mxu0 0.0
        %1374 = vmatpush2.msra.mxu0 0.0
        %1375 = vmatprep.subr.mxu0 0.0
        %1376 = vmatpush2.msra.mxu0 0.0
        %1377 = vmatprep.subr.mxu0 0.0
        %1378 = vmatpush2.msra.mxu0 0.0
        %1379 = vmatprep.subr.mxu0 0.0
        %1380 = vmatpush2.msra.mxu0 0.0
        %1381 = vmatprep.subr.mxu0 0.0
        %1382 = vmatpush2.msra.mxu0 0.0
        %1383 = vmatprep.subr.mxu0 0.0
        %1384 = vmatpush2.msra.mxu0 0.0
        %1385 = vmatprep.subr.mxu0 0.0
        %1386 = vmatpush2.msra.mxu0 0.0
        %1387 = vmatprep.subr.mxu0 0.0
        %1388 = vmatpush2.msra.mxu0 0.0
        %1389 = vmatprep.subr.mxu0 0.0
        %1390 = vmatpush2.msra.mxu0 %v507
        %1391 = vmatprep.subr.mxu0 0.0
        %1392 = vmatpush2.msra.mxu0 %v506
        %1393 = vmatprep.subr.mxu0 0.0
        %1394 = vmatpush2.msra.mxu0 %v505
        %1395 = vmatprep.subr.mxu0 0.0
        %1396 = vmatpush2.msra.mxu0 %v504
        %1397 = vmatprep.mubr.f32.mxu0 %v1328
        %1398 = vmatmul.mubr.f32.gmra.mxu0 %v1322
        %v1399 = vpop.f32.mrf.mxu0
        %v1400 = vadd.f32 0.0, %v1399
        %v1401 = vpop.f32.mrf.mxu0
        %1402 = vmatprep.mubr.f32.mxu0 %v1331
        %1403 = vmatmul.mubr.f32.gmra.mxu0 %v1324
        %v1404 = vpop.f32.mrf.mxu0
        %v1405 = vadd.f32 0.0, %v1404
        %v1406 = vpop.f32.mrf.mxu0
        %1407 = vdwg.mxu0
        %v1408 = vmul.f32 %v1400, %v508
        %v1409 = vmul.f32 %v1405, %v509
        %vm1410 = vcmask 818176
        %v1411 = vsel %vm1410, %v1408, 0.0
        %vm1412 = vcmask 812032
        %v1413 = vsel %vm1412, %v1409, 0.0
        %v1414 = vadd.f32 %v1411, %v1413
        %v1415 = vrot.slane %v1414, 4
        %v1416 = vadd.f32 %v1414, %v1415
        %v1417 = vrot.slane %v1416, 2
        %v1418 = vadd.f32 %v1416, %v1417
        %v1419 = vrot.slane %v1418, 1
        %v1420 = vadd.f32 %v1418, %v1419
        %v1422 = vsel %vm1410, %v1420, 0
        %v1425 = vsel %vm538, %v522, 0
        %1427 = vmatprep.subr.mxu0 0.0
        %1428 = vmatpush1.msra.mxu0 0.0
        %1429 = vmatprep.subr.mxu0 0.0
        %1430 = vmatpush1.msra.mxu0 0.0
        %1431 = vmatprep.subr.mxu0 0.0
        %1432 = vmatpush1.msra.mxu0 0.0
        %1433 = vmatprep.subr.mxu0 0.0
        %1434 = vmatpush1.msra.mxu0 %v1425
        %1435 = vmatprep.subr.mxu0 0.0
        %1436 = vmatpush1.msra.mxu0 %v521
        %1437 = vmatprep.subr.mxu0 0.0
        %1438 = vmatpush1.msra.mxu0 %v520
        %1439 = vmatprep.subr.mxu0 0.0
        %1440 = vmatpush1.msra.mxu0 %v519
        %1441 = vmatprep.subr.mxu0 0.0
        %1442 = vmatpush1.msra.mxu0 %v518
        %1443 = vmatprep.subr.mxu0 0.0
        %1444 = vmatpush1.msra.mxu0 %v517
        %1445 = vmatprep.subr.mxu0 0.0
        %1446 = vmatpush1.msra.mxu0 %v516
        %1447 = vmatprep.subr.mxu0 0.0
        %1448 = vmatpush1.msra.mxu0 %v515
        %1449 = vmatprep.subr.mxu0 0.0
        %1450 = vmatpush1.msra.mxu0 %v514
        %1451 = vmatprep.subr.mxu0 0.0
        %1452 = vmatpush1.msra.mxu0 %v513
        %1453 = vmatprep.subr.mxu0 0.0
        %1454 = vmatpush1.msra.mxu0 %v512
        %1455 = vmatprep.subr.mxu0 0.0
        %1456 = vmatpush1.msra.mxu0 %v511
        %1457 = vmatprep.subr.mxu0 0.0
        %1458 = vmatpush1.msra.mxu0 %v510
        %1459 = vmatprep.subr.mxu0 0.0
        %1460 = vmatpush2.msra.mxu0 0.0
        %1461 = vmatprep.subr.mxu0 0.0
        %1462 = vmatpush2.msra.mxu0 0.0
        %1463 = vmatprep.subr.mxu0 0.0
        %1464 = vmatpush2.msra.mxu0 0.0
        %1465 = vmatprep.subr.mxu0 0.0
        %1466 = vmatpush2.msra.mxu0 0.0
        %1467 = vmatprep.subr.mxu0 0.0
        %1468 = vmatpush2.msra.mxu0 0.0
        %1469 = vmatprep.subr.mxu0 0.0
        %1470 = vmatpush2.msra.mxu0 0.0
        %1471 = vmatprep.subr.mxu0 0.0
        %1472 = vmatpush2.msra.mxu0 0.0
        %1473 = vmatprep.subr.mxu0 0.0
        %1474 = vmatpush2.msra.mxu0 0.0
        %1475 = vmatprep.subr.mxu0 0.0
        %1476 = vmatpush2.msra.mxu0 0.0
        %1477 = vmatprep.subr.mxu0 0.0
        %1478 = vmatpush2.msra.mxu0 0.0
        %1479 = vmatprep.subr.mxu0 0.0
        %1480 = vmatpush2.msra.mxu0 0.0
        %1481 = vmatprep.subr.mxu0 0.0
        %1482 = vmatpush2.msra.mxu0 0.0
        %1483 = vmatprep.subr.mxu0 0.0
        %1484 = vmatpush2.msra.mxu0 0.0
        %1485 = vmatprep.subr.mxu0 0.0
        %1486 = vmatpush2.msra.mxu0 0.0
        %1487 = vmatprep.subr.mxu0 0.0
        %1488 = vmatpush2.msra.mxu0 0.0
        %1489 = vmatprep.subr.mxu0 0.0
        %1490 = vmatpush2.msra.mxu0 0.0
        %1491 = vmatprep.mubr.f32.mxu0 0.0
        %1492 = vmatmul.mubr.f32.gmra.mxu0 %v1422
        %v1493 = vpop.f32.mrf.mxu0
        %v1494 = vadd.f32 %v523, %v1493
        %v1495 = vpop.f32.mrf.mxu0
        %1496 = vdwg.mxu0
        %vm1497 = vcmask 73728
        %1498 = vst.msk [vmem:[%s378] sm:$0x1] %vm1497, %v1494
        %s1499 = sand.u32 %s269, 1
        %s1500 = scalar_lea.sflag [#allocation3], %s1499
        %s1501 = sand.u32 %s269, 1
        %s1502 = scalar_lea.vmem [#allocation2], %s1501
        // Predicated region
        $region65: #{cnn_forward.1} parent=63 // pred_check
          %p1503 = pneg %p279
        $region66: #{cnn_forward.1} parent=63 // pred_check_branch
          %1505 = sbr.rel (%p1503) target = $region68
        $region67: #{cnn_forward.1} parent=63 // pred_region
          %s1507 = ssub.s32 16, 16
          %1508 = vsyncadd %s1500, %s1507
          %s1509 = smul.addr %s25, 16
          %s1510 = scalar_lea.hbm %s11, %s1509
          %s1512 = sshll.u32 %s1502, 4
          %s1513 = int_to_ptr.vmem [resolvable:$true] %s1512
          %1515 = dma.vmem_to_hbm [thread:$0]  %s1513, 16, %s1510, %s1500
        $region68: #{cnn_forward.1} parent=63 // pred_fallthru
          _
      $region64: #{cnn_forward.1} parent=5 // pred_fallthru
        _
      %p1516 = scmp.le.s32.totalorder 2, %s20
      // Predicated region
      $region69: #{cnn_forward.1} parent=5 // pred_check
        %p1517 = pneg %p1516
      $region70: #{cnn_forward.1} parent=5 // pred_check_branch
        %1519 = sbr.rel (%p1517) target = $region72
      $region71: #{cnn_forward.1} parent=5 // pred_region
        %s1520 = ssub.s32 %s20, 2
        // Predicated region
        $region73: #{cnn_forward.1} parent=71 // pred_check
          %p1521 = pneg %p285
        $region74: #{cnn_forward.1} parent=71 // pred_check_branch
          %1523 = sbr.rel (%p1521) target = $region76
        $region75: #{cnn_forward.1} parent=71 // pred_region
          %s1524 = sand.u32 %s270, 1
          %s1525 = scalar_lea.sflag [#allocation3], %s1524
          %s1526 = sand.u32 %s270, 1
          %s1527 = scalar_lea.vmem [#allocation2], %s1526
          %1528 = dma.done %s1525, 16
        $region76: #{cnn_forward.1} parent=71 // pred_fallthru
          _
      $region72: #{cnn_forward.1} parent=5 // pred_fallthru
        _
    $region6: #{cnn_forward.1} parent=1 // loop_footer
      %s24 = sadd.s32 1, %s20
    $region7: #{cnn_forward.1} parent=1 // loop_footer_branch
      %19 = sbr.rel target = $region3
    $region8: #{cnn_forward.1} parent=1 // loop_exit
      _
    %1529 = vsyncpa [#allocation3], 1
    %s1530 = scalar_lea.sflag [#allocation3], 1
    %1531 = vsyncpa %s1530, 1

</llo_original>
